<compile_context>
chip_gen: v7x
topology: tpu7x:2x2x1
jax: 0.10.0
libtpu: 0.0.40
codegen_flags: <defaults>
</compile_context>

<pallas_src>
import jax
import jax.numpy as jnp
from jax.experimental import pallas as pl
from jax.experimental.pallas import tpu as pltpu

LANES = 128                      # lane-dense output width for conv matmuls and fc2
MATMUL_DTYPE = jnp.bfloat16      # MXU input / conv-activation dtype (f32 accumulation kept)
NEG_BIG = -1e30                  # softmax mask value for padded logit lanes
FC_TILE_B = 512                  # fc batch-row tile (multiple of 16)


def _round_up(x, m):
    return (x + m - 1) // m * m


def _tpu_budgets():
    """Generation-aware (vmem_limit_bytes, conv row tile)."""
    cap = None
    try:
        cap = int(pltpu.get_tpu_info().vmem_capacity_bytes)
    except Exception:
        cap = None
    if cap is None:
        try:
            kind = jax.devices()[0].device_kind.lower()
            cap = (64 if "v7" in kind else 128) * 1024 * 1024
        except Exception:
            cap = 64 * 1024 * 1024
    if cap >= 100 * 1024 * 1024:            # v5e / v6e: 128 MiB physical VMEM
        return 96 * 1024 * 1024, 4096
    return 48 * 1024 * 1024, 2048            # v7x (64 MiB physical) or unknown


VMEM_LIMIT, CONV_TILE_M = _tpu_budgets()


# ---------------------------------------------------------------------------
# Pallas kernels
# ---------------------------------------------------------------------------

def conv_pool_relu_kernel(q_ref, w_ref, b_ref, o_ref):
    # Fused: conv (as im2col matmul) + bias + 2x2 max-pool + ReLU.
    # q_ref is [4, tm, K]: the patch matrices for the 4 positions inside each
    # 2x2 pool window, so max_pool(conv(x)+b) == max_q(q @ W) + b.
    # One long (4*tm, K) MXU push amortizes fill/drain vs. 4 short pushes.
    q = q_ref[...]
    four, tm, K = q.shape
    y = jnp.dot(q.reshape(four * tm, K), w_ref[...],
                preferred_element_type=jnp.float32)          # (4*tm, 128) f32
    y = jnp.max(y.reshape(four, tm, LANES), axis=0) + b_ref[...]
    o_ref[...] = jnp.maximum(y, 0.0).astype(o_ref.dtype)     # bf16 store


def fc_fused_kernel(x_ref, w1_ref, b1_ref, w2_ref, b2_ref, o_ref):
    # Fused: fc1 + bias + ReLU + fc2 + bias + softmax (row-wise).
    # fc2 is lane-padded to 128; padded lanes carry a -1e30 bias so they
    # contribute exp(...) == 0 to the softmax denominator.
    h = jnp.dot(x_ref[...], w1_ref[...], preferred_element_type=jnp.float32)
    h = jnp.maximum(h + b1_ref[...], 0.0)
    y = jnp.dot(h.astype(w2_ref.dtype), w2_ref[...],
                preferred_element_type=jnp.float32) + b2_ref[...]
    y = y - jnp.max(y, axis=-1, keepdims=True)
    e = jnp.exp(y)
    o_ref[...] = (e / jnp.sum(e, axis=-1, keepdims=True)).astype(o_ref.dtype)


# ---------------------------------------------------------------------------
# Wrappers
# ---------------------------------------------------------------------------

def conv_pool_relu(x, w_mat, b_row, cout, *, k=5, tile_m=None):
    """Fused conv(k x k, valid) + bias + 2x2 maxpool + ReLU.

    x:     [B, H, W, Cin]  (NHWC)
    w_mat: [k*k*Cin, 128]  (rows in (kh, kw, cin) order, Cout lane-padded, bf16)
    b_row: [1, 128]        (f32, lane-padded)
    Returns [B, (H-k+1)//2, (W-k+1)//2, cout]  (NHWC, bf16)
    """
    B, H, W, C = x.shape
    Ho, Wo = H - k + 1, W - k + 1
    OH, OW = Ho // 2, Wo // 2
    K = k * k * C
    M = B * OH * OW

    # im2col glue (XLA): build conv-output patches in (kh, kw, cin) feature
    # order, split by 2x2 pool position, and stack into ONE [4, M, K] bf16
    # array (single DMA stream / single pad / single cast).
    x = x.astype(MATMUL_DTYPE)
    cols = [x[:, di:di + Ho, dj:dj + Wo, :] for di in range(k) for dj in range(k)]
    p = jnp.stack(cols, axis=3).reshape(B, Ho, Wo, K)
    quads = jnp.stack(
        [p[:, ph::2, pw::2, :].reshape(M, K) for ph in range(2) for pw in range(2)],
        axis=0)                                              # [4, M, K] bf16

    tm = tile_m or CONV_TILE_M
    tm = min(tm, _round_up(M, 16))
    M_pad = _round_up(M, tm)
    if M_pad != M:
        quads = jnp.pad(quads, ((0, 0), (0, M_pad - M), (0, 0)))

    out = pl.pallas_call(
        conv_pool_relu_kernel,
        out_shape=jax.ShapeDtypeStruct((M_pad, LANES), MATMUL_DTYPE),
        grid=(M_pad // tm,),
        in_specs=[pl.BlockSpec((4, tm, K), lambda i: (0, i, 0)),
                  pl.BlockSpec((K, LANES), lambda i: (0, 0)),
                  pl.BlockSpec((1, LANES), lambda i: (0, 0))],
        out_specs=pl.BlockSpec((tm, LANES), lambda i: (i, 0)),
        compiler_params=pltpu.CompilerParams(
            dimension_semantics=("parallel",),
            vmem_limit_bytes=VMEM_LIMIT),
    )(quads, w_mat, b_row)

    return out[:M, :cout].reshape(B, OH, OW, cout)


def fc_fused(x, w1, b1, w2_pad, b2_pad, n_out):
    """Fused fc1 + ReLU + fc2 + softmax, row-tiled over the batch.

    x: [B, F] bf16 (NHWC-flattened features).  Returns [B, n_out] f32.
    """
    B, F = x.shape
    tb = min(FC_TILE_B, _round_up(B, 16))
    B_pad = _round_up(B, tb)
    x = x.astype(MATMUL_DTYPE)
    if B_pad != B:
        x = jnp.pad(x, ((0, B_pad - B), (0, 0)))

    out = pl.pallas_call(
        fc_fused_kernel,
        out_shape=jax.ShapeDtypeStruct((B_pad, LANES), jnp.float32),
        grid=(B_pad // tb,),
        in_specs=[pl.BlockSpec((tb, F), lambda i: (i, 0)),
                  pl.BlockSpec(w1.shape, lambda i: (0, 0)),
                  pl.BlockSpec(b1.shape, lambda i: (0, 0)),
                  pl.BlockSpec(w2_pad.shape, lambda i: (0, 0)),
                  pl.BlockSpec(b2_pad.shape, lambda i: (0, 0))],
        out_specs=pl.BlockSpec((tb, LANES), lambda i: (i, 0)),
        compiler_params=pltpu.CompilerParams(
            dimension_semantics=("parallel",),
            vmem_limit_bytes=VMEM_LIMIT),
    )(x, w1, b1, w2_pad, b2_pad)

    return out[:B, :n_out]


# ---------------------------------------------------------------------------
# Parameters (torch-layout) + one-time repack into kernel layouts
# ---------------------------------------------------------------------------

def init_params(key):
    ks = jax.random.split(key, 8)
    return {
        "conv1_w": jax.random.normal(ks[0], (10, 1, 5, 5), jnp.float32) * 0.10,
        "conv1_b": jax.random.normal(ks[1], (10,), jnp.float32) * 0.10,
        "conv2_w": jax.random.normal(ks[2], (20, 10, 5, 5), jnp.float32) * 0.05,
        "conv2_b": jax.random.normal(ks[3], (20,), jnp.float32) * 0.05,
        # fc1_w rows are in torch's NCHW flatten order (c*16 + h*4 + w)
        "fc1_w":   jax.random.normal(ks[4], (320, 50), jnp.float32) * 0.05,
        "fc1_b":   jax.random.normal(ks[5], (50,), jnp.float32) * 0.05,
        "fc2_w":   jax.random.normal(ks[6], (50, 10), jnp.float32) * 0.10,
        "fc2_b":   jax.random.normal(ks[7], (10,), jnp.float32) * 0.10,
    }


def prepare_params(p):
    """One-time repack: conv weights -> (kh,kw,cin,cout) matrix lane-padded to
    128; NCHW-flatten permutation folded into fc1_w; fc2 lane-padded to 128
    with a -1e30 bias in the padded lanes (softmax mask); MXU operands bf16."""
    def conv_w(w_torch):
        cout, cin, kh, kw = w_torch.shape
        m = jnp.transpose(w_torch, (2, 3, 1, 0)).reshape(kh * kw * cin, cout)
        return jnp.pad(m, ((0, 0), (0, LANES - cout))).astype(MATMUL_DTYPE)

    def conv_b(b):
        return jnp.pad(b, (0, LANES - b.shape[0])).reshape(1, LANES).astype(jnp.float32)

    # torch flattens [B,20,4,4] as idx = c*16 + h*4 + w; our activations arrive
    # NHWC-flattened as idx = (h*4 + w)*20 + c, so permute fc1_w's rows once.
    fc1_w_nhwc = jnp.transpose(p["fc1_w"].reshape(20, 4, 4, 50),
                               (1, 2, 0, 3)).reshape(320, 50)

    n_out = p["fc2_w"].shape[1]
    fc2_w_pad = jnp.pad(p["fc2_w"], ((0, 0), (0, LANES - n_out))).astype(MATMUL_DTYPE)
    fc2_b_pad = jnp.pad(p["fc2_b"].astype(jnp.float32), (0, LANES - n_out),
                        constant_values=NEG_BIG).reshape(1, LANES)

    return {
        "c1_w": conv_w(p["conv1_w"]), "c1_b": conv_b(p["conv1_b"]),
        "c2_w": conv_w(p["conv2_w"]), "c2_b": conv_b(p["conv2_b"]),
        "fc1_w": fc1_w_nhwc.astype(MATMUL_DTYPE),
        "fc1_b": p["fc1_b"].reshape(1, 50).astype(jnp.float32),
        "fc2_w": fc2_w_pad,
        "fc2_b": fc2_b_pad,
    }


# ---------------------------------------------------------------------------
# Forward
# ---------------------------------------------------------------------------

def cnn_forward(kp, x_nchw):
    # x_nchw: [B, 1, 28, 28] float32
    x = jnp.transpose(x_nchw, (0, 2, 3, 1))                # NHWC [B,28,28,1]
    x = conv_pool_relu(x, kp["c1_w"], kp["c1_b"], 10)      # [B,12,12,10] bf16
    # conv2_drop (Dropout2d): identity in eval mode
    x = conv_pool_relu(x, kp["c2_w"], kp["c2_b"], 20)      # [B,4,4,20] bf16
    feats = x.reshape(x.shape[0], -1)                      # NHWC flatten (perm folded into fc1_w)
    # F.dropout: identity in eval mode
    return fc_fused(feats, kp["fc1_w"], kp["fc1_b"],
                    kp["fc2_w"], kp["fc2_b"], 10)          # [B,10] f32 softmax


if __name__ == "__main__":
    key = jax.random.PRNGKey(0)
    pkey, xkey = jax.random.split(key)
    params = prepare_params(init_params(pkey))
    # Input must be [B, 1, 28, 28] so the flattened conv features are 320.
    x = jax.random.normal(xkey, (2, 1, 28, 28), jnp.float32)

    fwd = jax.jit(cnn_forward)
    out = jax.block_until_ready(fwd(params, x))

    assert out.shape == (2, 10), out.shape
    assert bool(jnp.all(jnp.isfinite(out)))
    # softmax rows should sum to ~1
    assert bool(jnp.all(jnp.abs(jnp.sum(out, axis=-1) - 1.0) < 1e-4))
    print("KERNEL_OK")
</pallas_src>

<mosaic_0001>
module attributes {stable_mosaic.version = 11 : i64} {
  func.func @conv_pool_relu_kernel(%arg0: i32, %arg1: memref<4x288x25xbf16, #tpu.memory_space<vmem>>, %arg2: memref<25x128xbf16, #tpu.memory_space<vmem>>, %arg3: memref<1x128xf32, #tpu.memory_space<vmem>>, %arg4: memref<288x128xbf16, #tpu.memory_space<vmem>>) attributes {dimension_semantics = [#tpu.dimension_semantics<parallel>], iteration_bounds = array<i64: 1>, scalar_prefetch = 0 : i64, scratch_operands = 0 : i64, tpu.core_type = #tpu.core_type<tc>, window_params = [{transform_indices = @transform_0, window_bounds = array<i64: 4, 288, 25>}, {pipeline_mode = #tpu.pipeline_mode<synchronous>, transform_indices = @transform_1, window_bounds = array<i64: 25, 128>}, {pipeline_mode = #tpu.pipeline_mode<synchronous>, transform_indices = @transform_2, window_bounds = array<i64: 1, 128>}, {transform_indices = @transform_3, window_bounds = array<i64: 288, 128>}]} {
    %c0 = arith.constant 0 : index
    %c0_0 = arith.constant 0 : index
    %c0_1 = arith.constant 0 : index
    %0 = vector.load %arg1[%c0, %c0_0, %c0_1] : memref<4x288x25xbf16, #tpu.memory_space<vmem>>, vector<4x288x25xbf16>
    %1 = vector.shape_cast %0 : vector<4x288x25xbf16> to vector<1152x25xbf16>
    %c0_2 = arith.constant 0 : index
    %c0_3 = arith.constant 0 : index
    %2 = vector.load %arg2[%c0_2, %c0_3] : memref<25x128xbf16, #tpu.memory_space<vmem>>, vector<25x128xbf16>
    %cst = arith.constant dense<0.000000e+00> : vector<1152x128xf32>
    %3 = tpu.matmul %1, %2, %cst {dimension_numbers = #tpu.dot_dimension_numbers<[1], [0], [0], [1], [0, 0, 1, 1], [], []>} : vector<1152x25xbf16>, vector<25x128xbf16>, vector<1152x128xf32> -> vector<1152x128xf32>
    %4 = vector.shape_cast %3 : vector<1152x128xf32> to vector<4x288x128xf32>
    %cst_4 = arith.constant dense<0xFF800000> : vector<288x128xf32>
    %5 = vector.multi_reduction <maximumf>, %4, %cst_4 [0] : vector<4x288x128xf32> to vector<288x128xf32>
    %c0_5 = arith.constant 0 : index
    %c0_6 = arith.constant 0 : index
    %6 = vector.load %arg3[%c0_5, %c0_6] : memref<1x128xf32, #tpu.memory_space<vmem>>, vector<1x128xf32>
    %7 = vector.broadcast %6 : vector<1x128xf32> to vector<288x128xf32>
    %8 = arith.addf %5, %7 : vector<288x128xf32>
    %cst_7 = arith.constant 0.000000e+00 : f32
    %9 = vector.broadcast %cst_7 : f32 to vector<288x128xf32>
    %10 = arith.maximumf %8, %9 : vector<288x128xf32>
    %11 = arith.truncf %10 : vector<288x128xf32> to vector<288x128xbf16>
    %c0_8 = arith.constant 0 : index
    %c0_9 = arith.constant 0 : index
    %12 = vector.load %arg4[%c0_8, %c0_9] : memref<288x128xbf16, #tpu.memory_space<vmem>>, vector<288x128xbf16>
    tpu.vector_store %arg4[%c0_8, %c0_9], %11 {strides = array<i32>} : memref<288x128xbf16, #tpu.memory_space<vmem>>, vector<288x128xbf16>,
    return
  }
  func.func @transform_0(%arg0: i32) -> (i32, i32, i32) {
    %c0_i32 = arith.constant 0 : i32
    %c0_i32_0 = arith.constant 0 : i32
    %c0_i32_1 = arith.constant 0 : i32
    return %c0_i32, %arg0, %c0_i32_0 : i32, i32, i32
  }
  func.func @transform_1(%arg0: i32) -> (i32, i32) {
    %c0_i32 = arith.constant 0 : i32
    %c0_i32_0 = arith.constant 0 : i32
    %c0_i32_1 = arith.constant 0 : i32
    return %c0_i32, %c0_i32_0 : i32, i32
  }
  func.func @transform_2(%arg0: i32) -> (i32, i32) {
    %c0_i32 = arith.constant 0 : i32
    %c0_i32_0 = arith.constant 0 : i32
    %c0_i32_1 = arith.constant 0 : i32
    return %c0_i32, %c0_i32_0 : i32, i32
  }
  func.func @transform_3(%arg0: i32) -> (i32, i32) {
    %c0_i32 = arith.constant 0 : i32
    %c0_i32_0 = arith.constant 0 : i32
    return %arg0, %c0_i32 : i32, i32
  }
}

module attributes {stable_mosaic.version = 11 : i64} {
  func.func @conv_pool_relu_kernel(%arg0: i32, %arg1: memref<4x32x250xbf16, #tpu.memory_space<vmem>>, %arg2: memref<250x128xbf16, #tpu.memory_space<vmem>>, %arg3: memref<1x128xf32, #tpu.memory_space<vmem>>, %arg4: memref<32x128xbf16, #tpu.memory_space<vmem>>) attributes {dimension_semantics = [#tpu.dimension_semantics<parallel>], iteration_bounds = array<i64: 1>, scalar_prefetch = 0 : i64, scratch_operands = 0 : i64, tpu.core_type = #tpu.core_type<tc>, window_params = [{transform_indices = @transform_0, window_bounds = array<i64: 4, 32, 250>}, {pipeline_mode = #tpu.pipeline_mode<synchronous>, transform_indices = @transform_1, window_bounds = array<i64: 250, 128>}, {pipeline_mode = #tpu.pipeline_mode<synchronous>, transform_indices = @transform_2, window_bounds = array<i64: 1, 128>}, {transform_indices = @transform_3, window_bounds = array<i64: 32, 128>}]} {
    %c0 = arith.constant 0 : index
    %c0_0 = arith.constant 0 : index
    %c0_1 = arith.constant 0 : index
    %0 = vector.load %arg1[%c0, %c0_0, %c0_1] : memref<4x32x250xbf16, #tpu.memory_space<vmem>>, vector<4x32x250xbf16>
    %1 = vector.shape_cast %0 : vector<4x32x250xbf16> to vector<128x250xbf16>
    %c0_2 = arith.constant 0 : index
    %c0_3 = arith.constant 0 : index
    %2 = vector.load %arg2[%c0_2, %c0_3] : memref<250x128xbf16, #tpu.memory_space<vmem>>, vector<250x128xbf16>
    %cst = arith.constant dense<0.000000e+00> : vector<128x128xf32>
    %3 = tpu.matmul %1, %2, %cst {dimension_numbers = #tpu.dot_dimension_numbers<[1], [0], [0], [1], [0, 0, 1, 1], [], []>} : vector<128x250xbf16>, vector<250x128xbf16>, vector<128x128xf32> -> vector<128x128xf32>
    %4 = vector.shape_cast %3 : vector<128x128xf32> to vector<4x32x128xf32>
    %cst_4 = arith.constant dense<0xFF800000> : vector<32x128xf32>
    %5 = vector.multi_reduction <maximumf>, %4, %cst_4 [0] : vector<4x32x128xf32> to vector<32x128xf32>
    %c0_5 = arith.constant 0 : index
    %c0_6 = arith.constant 0 : index
    %6 = vector.load %arg3[%c0_5, %c0_6] : memref<1x128xf32, #tpu.memory_space<vmem>>, vector<1x128xf32>
    %7 = vector.broadcast %6 : vector<1x128xf32> to vector<32x128xf32>
    %8 = arith.addf %5, %7 : vector<32x128xf32>
    %cst_7 = arith.constant 0.000000e+00 : f32
    %9 = vector.broadcast %cst_7 : f32 to vector<32x128xf32>
    %10 = arith.maximumf %8, %9 : vector<32x128xf32>
    %11 = arith.truncf %10 : vector<32x128xf32> to vector<32x128xbf16>
    %c0_8 = arith.constant 0 : index
    %c0_9 = arith.constant 0 : index
    %12 = vector.load %arg4[%c0_8, %c0_9] : memref<32x128xbf16, #tpu.memory_space<vmem>>, vector<32x128xbf16>
    tpu.vector_store %arg4[%c0_8, %c0_9], %11 {strides = array<i32>} : memref<32x128xbf16, #tpu.memory_space<vmem>>, vector<32x128xbf16>,
    return
  }
  func.func @transform_0(%arg0: i32) -> (i32, i32, i32) {
    %c0_i32 = arith.constant 0 : i32
    %c0_i32_0 = arith.constant 0 : i32
    %c0_i32_1 = arith.constant 0 : i32
    return %c0_i32, %arg0, %c0_i32_0 : i32, i32, i32
  }
  func.func @transform_1(%arg0: i32) -> (i32, i32) {
    %c0_i32 = arith.constant 0 : i32
    %c0_i32_0 = arith.constant 0 : i32
    %c0_i32_1 = arith.constant 0 : i32
    return %c0_i32, %c0_i32_0 : i32, i32
  }
  func.func @transform_2(%arg0: i32) -> (i32, i32) {
    %c0_i32 = arith.constant 0 : i32
    %c0_i32_0 = arith.constant 0 : i32
    %c0_i32_1 = arith.constant 0 : i32
    return %c0_i32, %c0_i32_0 : i32, i32
  }
  func.func @transform_3(%arg0: i32) -> (i32, i32) {
    %c0_i32 = arith.constant 0 : i32
    %c0_i32_0 = arith.constant 0 : i32
    return %arg0, %c0_i32 : i32, i32
  }
}

module attributes {stable_mosaic.version = 11 : i64} {
  func.func @fc_fused_kernel(%arg0: i32, %arg1: memref<16x320xbf16, #tpu.memory_space<vmem>>, %arg2: memref<320x50xbf16, #tpu.memory_space<vmem>>, %arg3: memref<1x50xf32, #tpu.memory_space<vmem>>, %arg4: memref<50x128xbf16, #tpu.memory_space<vmem>>, %arg5: memref<1x128xf32, #tpu.memory_space<vmem>>, %arg6: memref<16x128xf32, #tpu.memory_space<vmem>>) attributes {dimension_semantics = [#tpu.dimension_semantics<parallel>], iteration_bounds = array<i64: 1>, scalar_prefetch = 0 : i64, scratch_operands = 0 : i64, tpu.core_type = #tpu.core_type<tc>, window_params = [{transform_indices = @transform_0, window_bounds = array<i64: 16, 320>}, {pipeline_mode = #tpu.pipeline_mode<synchronous>, transform_indices = @transform_1, window_bounds = array<i64: 320, 50>}, {pipeline_mode = #tpu.pipeline_mode<synchronous>, transform_indices = @transform_2, window_bounds = array<i64: 1, 50>}, {pipeline_mode = #tpu.pipeline_mode<synchronous>, transform_indices = @transform_3, window_bounds = array<i64: 50, 128>}, {pipeline_mode = #tpu.pipeline_mode<synchronous>, transform_indices = @transform_4, window_bounds = array<i64: 1, 128>}, {transform_indices = @transform_5, window_bounds = array<i64: 16, 128>}]} {
    %c0 = arith.constant 0 : index
    %c0_0 = arith.constant 0 : index
    %0 = vector.load %arg1[%c0, %c0_0] : memref<16x320xbf16, #tpu.memory_space<vmem>>, vector<16x320xbf16>
    %c0_1 = arith.constant 0 : index
    %c0_2 = arith.constant 0 : index
    %1 = vector.load %arg2[%c0_1, %c0_2] : memref<320x50xbf16, #tpu.memory_space<vmem>>, vector<320x50xbf16>
    %cst = arith.constant dense<0.000000e+00> : vector<16x50xf32>
    %2 = tpu.matmul %0, %1, %cst {dimension_numbers = #tpu.dot_dimension_numbers<[1], [0], [0], [1], [0, 0, 1, 1], [], []>} : vector<16x320xbf16>, vector<320x50xbf16>, vector<16x50xf32> -> vector<16x50xf32>
    %c0_3 = arith.constant 0 : index
    %c0_4 = arith.constant 0 : index
    %3 = vector.load %arg3[%c0_3, %c0_4] : memref<1x50xf32, #tpu.memory_space<vmem>>, vector<1x50xf32>
    %4 = vector.broadcast %3 : vector<1x50xf32> to vector<16x50xf32>
    %5 = arith.addf %2, %4 : vector<16x50xf32>
    %cst_5 = arith.constant 0.000000e+00 : f32
    %6 = vector.broadcast %cst_5 : f32 to vector<16x50xf32>
    %7 = arith.maximumf %5, %6 : vector<16x50xf32>
    %8 = arith.truncf %7 : vector<16x50xf32> to vector<16x50xbf16>
    %c0_6 = arith.constant 0 : index
    %c0_7 = arith.constant 0 : index
    %9 = vector.load %arg4[%c0_6, %c0_7] : memref<50x128xbf16, #tpu.memory_space<vmem>>, vector<50x128xbf16>
    %cst_8 = arith.constant dense<0.000000e+00> : vector<16x128xf32>
    %10 = tpu.matmul %8, %9, %cst_8 {dimension_numbers = #tpu.dot_dimension_numbers<[1], [0], [0], [1], [0, 0, 1, 1], [], []>} : vector<16x50xbf16>, vector<50x128xbf16>, vector<16x128xf32> -> vector<16x128xf32>
    %c0_9 = arith.constant 0 : index
    %c0_10 = arith.constant 0 : index
    %11 = vector.load %arg5[%c0_9, %c0_10] : memref<1x128xf32, #tpu.memory_space<vmem>>, vector<1x128xf32>
    %12 = vector.broadcast %11 : vector<1x128xf32> to vector<16x128xf32>
    %13 = arith.addf %10, %12 : vector<16x128xf32>
    %cst_11 = arith.constant dense<0xFF800000> : vector<16xf32>
    %14 = vector.multi_reduction <maximumf>, %13, %cst_11 [1] : vector<16x128xf32> to vector<16xf32>
    %15 = vector.shape_cast %14 : vector<16xf32> to vector<16x1xf32>
    %16 = vector.broadcast %15 : vector<16x1xf32> to vector<16x128xf32>
    %17 = arith.subf %13, %16 : vector<16x128xf32>
    %18 = math.exp %17 : vector<16x128xf32>
    %cst_12 = arith.constant dense<0.000000e+00> : vector<16xf32>
    %19 = vector.multi_reduction <add>, %18, %cst_12 [1] : vector<16x128xf32> to vector<16xf32>
    %20 = vector.shape_cast %19 : vector<16xf32> to vector<16x1xf32>
    %21 = vector.broadcast %20 : vector<16x1xf32> to vector<16x128xf32>
    %22 = arith.divf %18, %21 : vector<16x128xf32>
    %c0_13 = arith.constant 0 : index
    %c0_14 = arith.constant 0 : index
    %23 = vector.load %arg6[%c0_13, %c0_14] : memref<16x128xf32, #tpu.memory_space<vmem>>, vector<16x128xf32>
    tpu.vector_store %arg6[%c0_13, %c0_14], %22 {strides = array<i32>} : memref<16x128xf32, #tpu.memory_space<vmem>>, vector<16x128xf32>,
    return
  }
  func.func @transform_0(%arg0: i32) -> (i32, i32) {
    %c0_i32 = arith.constant 0 : i32
    %c0_i32_0 = arith.constant 0 : i32
    return %arg0, %c0_i32 : i32, i32
  }
  func.func @transform_1(%arg0: i32) -> (i32, i32) {
    %c0_i32 = arith.constant 0 : i32
    %c0_i32_0 = arith.constant 0 : i32
    %c0_i32_1 = arith.constant 0 : i32
    return %c0_i32, %c0_i32_0 : i32, i32
  }
  func.func @transform_2(%arg0: i32) -> (i32, i32) {
    %c0_i32 = arith.constant 0 : i32
    %c0_i32_0 = arith.constant 0 : i32
    %c0_i32_1 = arith.constant 0 : i32
    return %c0_i32, %c0_i32_0 : i32, i32
  }
  func.func @transform_3(%arg0: i32) -> (i32, i32) {
    %c0_i32 = arith.constant 0 : i32
    %c0_i32_0 = arith.constant 0 : i32
    %c0_i32_1 = arith.constant 0 : i32
    return %c0_i32, %c0_i32_0 : i32, i32
  }
  func.func @transform_4(%arg0: i32) -> (i32, i32) {
    %c0_i32 = arith.constant 0 : i32
    %c0_i32_0 = arith.constant 0 : i32
    %c0_i32_1 = arith.constant 0 : i32
    return %c0_i32, %c0_i32_0 : i32, i32
  }
  func.func @transform_5(%arg0: i32) -> (i32, i32) {
    %c0_i32 = arith.constant 0 : i32
    %c0_i32_0 = arith.constant 0 : i32
    return %arg0, %c0_i32 : i32, i32
  }
}

</mosaic_0001>

<llo_original>
// kernel: cnn_forward.3
$region0: #{cnn_forward.3}
  #allocation0 [shape = 'u32[]', space=smem, size = 0x4, offset = 0x4, fixed_abs, tag = 'smem constant byte address 0x4 - core index']
  #allocation1 [shape = 'u32[144,128]{1,0:T(1,128)}', space=vmem, size = 0x12000, scoped, tag = 'internal scratch']
  %s0 = inlined_call_operand.hbm [shape: bf16[4,288,25], index: 0, kind: input, shape index: {}]
  %s1 = inlined_call_operand.hbm [shape: bf16[25,128], index: 1, kind: input, shape index: {}]
  %s2 = inlined_call_operand.hbm [shape: f32[1,128], index: 2, kind: input, shape index: {}]
  %s3 = inlined_call_operand.hbm [shape: bf16[288,128], index: 3, kind: output, shape index: {}]
  %s4 = sld [smem:[#allocation0]]
  $region34: #{cnn_forward.3} parent=0
    _
  %s6 = ssub.s32 1, %s4
  %s7 = scalar_select 0, %s6, %s4
  $region1: #{cnn_forward.3} parent=0
    #allocation2 [shape = 'u8[294912]{0}', space=vmem, size = 0x48000, scoped, tag = 'input window, operand 0, single buffered']
    #allocation3 [shape = 's32[1]{0}', space=sflag, size = 0x4, scoped, tag = 'scoped memory for cnn_forward.3']
    #allocation4 [shape = 's32[1]{0}', space=sflag, size = 0x4, scoped, tag = 'scoped memory for cnn_forward.3']
    #allocation5 [shape = 'u8[8192]{0}', space=vmem, size = 0x2000, scoped, tag = 'input window, operand 1, single buffered']
    #allocation6 [shape = 's32[1]{0}', space=sflag, size = 0x4, scoped, tag = 'scoped memory for cnn_forward.3']
    #allocation7 [shape = 'u8[512]{0}', space=vmem, size = 0x400, scoped, tag = 'input window, operand 2, single buffered']
    #allocation8 [shape = 'u8[73728]{0}', space=vmem, size = 0x12000, scoped, tag = 'output window, operand 0, single buffered']
    %8 = vsyncpa [#allocation3], 0
    %9 = vsyncpa [#allocation6], 0
    %10 = vsyncpa [#allocation4], 0
    // Predicated region
    $region2: #{cnn_forward.3} parent=1 // pred_check
      _
    $region3: #{cnn_forward.3} parent=1 // pred_check_branch
      %12 = sbr.rel (0) target = $region5
    $region4: #{cnn_forward.3} parent=1 // pred_region
      %s14 = ssub.s32 9216, 9216
      %15 = vsyncadd [#allocation3], %s14
      %s16 = sshll.u32 [#allocation2], 4
      %s17 = int_to_ptr.vmem [resolvable:$true] %s16
      %22 = dma.hbm_to_vmem [thread:$0]  %s0, 9216, %s17, [#allocation3], 64, 64, 4
    $region5: #{cnn_forward.3} parent=1 // pred_fallthru
      _
    // Predicated region
    $region6: #{cnn_forward.3} parent=1 // pred_check
      _
    $region7: #{cnn_forward.3} parent=1 // pred_check_branch
      %24 = sbr.rel (0) target = $region9
    $region8: #{cnn_forward.3} parent=1 // pred_region
      %s26 = ssub.s32 256, 256
      %27 = vsyncadd [#allocation6], %s26
      %s28 = sshll.u32 [#allocation5], 4
      %s29 = int_to_ptr.vmem [resolvable:$true] %s28
      %34 = dma.hbm_to_vmem [thread:$0]  %s1, 256, %s29, [#allocation6], 64, 64, 4
    $region9: #{cnn_forward.3} parent=1 // pred_fallthru
      _
    // Predicated region
    $region10: #{cnn_forward.3} parent=1 // pred_check
      _
    $region11: #{cnn_forward.3} parent=1 // pred_check_branch
      %36 = sbr.rel (0) target = $region13
    $region12: #{cnn_forward.3} parent=1 // pred_region
      %s38 = ssub.s32 16, 16
      %39 = vsyncadd [#allocation6], %s38
      %s41 = sshll.u32 [#allocation7], 4
      %s42 = int_to_ptr.vmem [resolvable:$true] %s41
      %44 = dma.hbm_to_vmem [thread:$0]  %s2, 16, %s42, [#allocation6]
    $region13: #{cnn_forward.3} parent=1 // pred_fallthru
      _
    // Predicated region
    $region14: #{cnn_forward.3} parent=1 // pred_check
      _
    $region15: #{cnn_forward.3} parent=1 // pred_check_branch
      %46 = sbr.rel (0) target = $region17
    $region16: #{cnn_forward.3} parent=1 // pred_region
      %47 = dma.done [#allocation3], 9216
    $region17: #{cnn_forward.3} parent=1 // pred_fallthru
      _
    // Predicated region
    $region18: #{cnn_forward.3} parent=1 // pred_check
      _
    $region19: #{cnn_forward.3} parent=1 // pred_check_branch
      %49 = sbr.rel (0) target = $region21
    $region20: #{cnn_forward.3} parent=1 // pred_region
      %50 = dma.done [#allocation6], 256
    $region21: #{cnn_forward.3} parent=1 // pred_fallthru
      _
    // Predicated region
    $region22: #{cnn_forward.3} parent=1 // pred_check
      _
    $region23: #{cnn_forward.3} parent=1 // pred_check_branch
      %52 = sbr.rel (0) target = $region25
    $region24: #{cnn_forward.3} parent=1 // pred_region
      %53 = dma.done [#allocation6], 16
    $region25: #{cnn_forward.3} parent=1 // pred_fallthru
      _
    %v55 = vld [vmem:[#allocation2] sm:$0xf]
    %v56 = vld [vmem:[#allocation2 + $0x4] sm:$0xf]
    %v57 = vld [vmem:[#allocation2 + $0x8] sm:$0xf]
    %v58 = vld [vmem:[#allocation2 + $0xc] sm:$0xf]
    %v59 = vld [vmem:[#allocation2 + $0x10] sm:$0xf]
    %v60 = vld [vmem:[#allocation2 + $0x14] sm:$0xf]
    %v61 = vld [vmem:[#allocation2 + $0x18] sm:$0xf]
    %v62 = vld [vmem:[#allocation2 + $0x1c] sm:$0xf]
    %v63 = vld [vmem:[#allocation2 + $0x20] sm:$0xf]
    %v64 = vld [vmem:[#allocation2 + $0x24] sm:$0xf]
    %v65 = vld [vmem:[#allocation2 + $0x28] sm:$0xf]
    %v66 = vld [vmem:[#allocation2 + $0x2c] sm:$0xf]
    %v67 = vld [vmem:[#allocation2 + $0x30] sm:$0xf]
    %v68 = vld [vmem:[#allocation2 + $0x34] sm:$0xf]
    %v69 = vld [vmem:[#allocation2 + $0x38] sm:$0xf]
    %v70 = vld [vmem:[#allocation2 + $0x3c] sm:$0xf]
    %v71 = vld [vmem:[#allocation2 + $0x40] sm:$0xf]
    %v72 = vld [vmem:[#allocation2 + $0x44] sm:$0xf]
    %v73 = vld [vmem:[#allocation2 + $0x48] sm:$0xf]
    %v74 = vld [vmem:[#allocation2 + $0x4c] sm:$0xf]
    %v75 = vld [vmem:[#allocation2 + $0x50] sm:$0xf]
    %v76 = vld [vmem:[#allocation2 + $0x54] sm:$0xf]
    %v77 = vld [vmem:[#allocation2 + $0x58] sm:$0xf]
    %v78 = vld [vmem:[#allocation2 + $0x5c] sm:$0xf]
    %v79 = vld [vmem:[#allocation2 + $0x60] sm:$0xf]
    %v80 = vld [vmem:[#allocation2 + $0x64] sm:$0xf]
    %v81 = vld [vmem:[#allocation2 + $0x68] sm:$0xf]
    %v82 = vld [vmem:[#allocation2 + $0x6c] sm:$0xf]
    %v83 = vld [vmem:[#allocation2 + $0x70] sm:$0xf]
    %v84 = vld [vmem:[#allocation2 + $0x74] sm:$0xf]
    %v85 = vld [vmem:[#allocation2 + $0x78] sm:$0xf]
    %v86 = vld [vmem:[#allocation2 + $0x7c] sm:$0xf]
    %v87 = vld [vmem:[#allocation2 + $0x80] sm:$0xf]
    %v88 = vld [vmem:[#allocation2 + $0x84] sm:$0xf]
    %v89 = vld [vmem:[#allocation2 + $0x88] sm:$0xf]
    %v90 = vld [vmem:[#allocation2 + $0x8c] sm:$0xf]
    %v91 = vld [vmem:[#allocation2 + $0x90] sm:$0xf]
    %v92 = vld [vmem:[#allocation2 + $0x94] sm:$0xf]
    %v93 = vld [vmem:[#allocation2 + $0x98] sm:$0xf]
    %v94 = vld [vmem:[#allocation2 + $0x9c] sm:$0xf]
    %v95 = vld [vmem:[#allocation2 + $0xa0] sm:$0xf]
    %v96 = vld [vmem:[#allocation2 + $0xa4] sm:$0xf]
    %v97 = vld [vmem:[#allocation2 + $0xa8] sm:$0xf]
    %v98 = vld [vmem:[#allocation2 + $0xac] sm:$0xf]
    %v99 = vld [vmem:[#allocation2 + $0xb0] sm:$0xf]
    %v100 = vld [vmem:[#allocation2 + $0xb4] sm:$0xf]
    %v101 = vld [vmem:[#allocation2 + $0xb8] sm:$0xf]
    %v102 = vld [vmem:[#allocation2 + $0xbc] sm:$0xf]
    %v103 = vld [vmem:[#allocation2 + $0xc0] sm:$0xf]
    %v104 = vld [vmem:[#allocation2 + $0xc4] sm:$0xf]
    %v105 = vld [vmem:[#allocation2 + $0xc8] sm:$0xf]
    %v106 = vld [vmem:[#allocation2 + $0xcc] sm:$0xf]
    %v107 = vld [vmem:[#allocation2 + $0xd0] sm:$0xf]
    %v108 = vld [vmem:[#allocation2 + $0xd4] sm:$0xf]
    %v109 = vld [vmem:[#allocation2 + $0xd8] sm:$0xf]
    %v110 = vld [vmem:[#allocation2 + $0xdc] sm:$0xf]
    %v111 = vld [vmem:[#allocation2 + $0xe0] sm:$0xf]
    %v112 = vld [vmem:[#allocation2 + $0xe4] sm:$0xf]
    %v113 = vld [vmem:[#allocation2 + $0xe8] sm:$0xf]
    %v114 = vld [vmem:[#allocation2 + $0xec] sm:$0xf]
    %v115 = vld [vmem:[#allocation2 + $0xf0] sm:$0xf]
    %v116 = vld [vmem:[#allocation2 + $0xf4] sm:$0xf]
    %v117 = vld [vmem:[#allocation2 + $0xf8] sm:$0xf]
    %v118 = vld [vmem:[#allocation2 + $0xfc] sm:$0xf]
    %v119 = vld [vmem:[#allocation2 + $0x100] sm:$0xf]
    %v120 = vld [vmem:[#allocation2 + $0x104] sm:$0xf]
    %v121 = vld [vmem:[#allocation2 + $0x108] sm:$0xf]
    %v122 = vld [vmem:[#allocation2 + $0x10c] sm:$0xf]
    %v123 = vld [vmem:[#allocation2 + $0x110] sm:$0xf]
    %v124 = vld [vmem:[#allocation2 + $0x114] sm:$0xf]
    %v125 = vld [vmem:[#allocation2 + $0x118] sm:$0xf]
    %v126 = vld [vmem:[#allocation2 + $0x11c] sm:$0xf]
    %v127 = vld [vmem:[#allocation2 + $0x120] sm:$0xf]
    %v128 = vld [vmem:[#allocation2 + $0x124] sm:$0xf]
    %v129 = vld [vmem:[#allocation2 + $0x128] sm:$0xf]
    %v130 = vld [vmem:[#allocation2 + $0x12c] sm:$0xf]
    %v131 = vld [vmem:[#allocation2 + $0x130] sm:$0xf]
    %v132 = vld [vmem:[#allocation2 + $0x134] sm:$0xf]
    %v133 = vld [vmem:[#allocation2 + $0x138] sm:$0xf]
    %v134 = vld [vmem:[#allocation2 + $0x13c] sm:$0xf]
    %v135 = vld [vmem:[#allocation2 + $0x140] sm:$0xf]
    %v136 = vld [vmem:[#allocation2 + $0x144] sm:$0xf]
    %v137 = vld [vmem:[#allocation2 + $0x148] sm:$0xf]
    %v138 = vld [vmem:[#allocation2 + $0x14c] sm:$0xf]
    %v139 = vld [vmem:[#allocation2 + $0x150] sm:$0xf]
    %v140 = vld [vmem:[#allocation2 + $0x154] sm:$0xf]
    %v141 = vld [vmem:[#allocation2 + $0x158] sm:$0xf]
    %v142 = vld [vmem:[#allocation2 + $0x15c] sm:$0xf]
    %v143 = vld [vmem:[#allocation2 + $0x160] sm:$0xf]
    %v144 = vld [vmem:[#allocation2 + $0x164] sm:$0xf]
    %v145 = vld [vmem:[#allocation2 + $0x168] sm:$0xf]
    %v146 = vld [vmem:[#allocation2 + $0x16c] sm:$0xf]
    %v147 = vld [vmem:[#allocation2 + $0x170] sm:$0xf]
    %v148 = vld [vmem:[#allocation2 + $0x174] sm:$0xf]
    %v149 = vld [vmem:[#allocation2 + $0x178] sm:$0xf]
    %v150 = vld [vmem:[#allocation2 + $0x17c] sm:$0xf]
    %v151 = vld [vmem:[#allocation2 + $0x180] sm:$0xf]
    %v152 = vld [vmem:[#allocation2 + $0x184] sm:$0xf]
    %v153 = vld [vmem:[#allocation2 + $0x188] sm:$0xf]
    %v154 = vld [vmem:[#allocation2 + $0x18c] sm:$0xf]
    %v155 = vld [vmem:[#allocation2 + $0x190] sm:$0xf]
    %v156 = vld [vmem:[#allocation2 + $0x194] sm:$0xf]
    %v157 = vld [vmem:[#allocation2 + $0x198] sm:$0xf]
    %v158 = vld [vmem:[#allocation2 + $0x19c] sm:$0xf]
    %v159 = vld [vmem:[#allocation2 + $0x1a0] sm:$0xf]
    %v160 = vld [vmem:[#allocation2 + $0x1a4] sm:$0xf]
    %v161 = vld [vmem:[#allocation2 + $0x1a8] sm:$0xf]
    %v162 = vld [vmem:[#allocation2 + $0x1ac] sm:$0xf]
    %v163 = vld [vmem:[#allocation2 + $0x1b0] sm:$0xf]
    %v164 = vld [vmem:[#allocation2 + $0x1b4] sm:$0xf]
    %v165 = vld [vmem:[#allocation2 + $0x1b8] sm:$0xf]
    %v166 = vld [vmem:[#allocation2 + $0x1bc] sm:$0xf]
    %v167 = vld [vmem:[#allocation2 + $0x1c0] sm:$0xf]
    %v168 = vld [vmem:[#allocation2 + $0x1c4] sm:$0xf]
    %v169 = vld [vmem:[#allocation2 + $0x1c8] sm:$0xf]
    %v170 = vld [vmem:[#allocation2 + $0x1cc] sm:$0xf]
    %v171 = vld [vmem:[#allocation2 + $0x1d0] sm:$0xf]
    %v172 = vld [vmem:[#allocation2 + $0x1d4] sm:$0xf]
    %v173 = vld [vmem:[#allocation2 + $0x1d8] sm:$0xf]
    %v174 = vld [vmem:[#allocation2 + $0x1dc] sm:$0xf]
    %v175 = vld [vmem:[#allocation2 + $0x1e0] sm:$0xf]
    %v176 = vld [vmem:[#allocation2 + $0x1e4] sm:$0xf]
    %v177 = vld [vmem:[#allocation2 + $0x1e8] sm:$0xf]
    %v178 = vld [vmem:[#allocation2 + $0x1ec] sm:$0xf]
    %v179 = vld [vmem:[#allocation2 + $0x1f0] sm:$0xf]
    %v180 = vld [vmem:[#allocation2 + $0x1f4] sm:$0xf]
    %v181 = vld [vmem:[#allocation2 + $0x1f8] sm:$0xf]
    %v182 = vld [vmem:[#allocation2 + $0x1fc] sm:$0xf]
    %v183 = vld [vmem:[#allocation2 + $0x200] sm:$0xf]
    %v184 = vld [vmem:[#allocation2 + $0x204] sm:$0xf]
    %v185 = vld [vmem:[#allocation2 + $0x208] sm:$0xf]
    %v186 = vld [vmem:[#allocation2 + $0x20c] sm:$0xf]
    %v187 = vld [vmem:[#allocation2 + $0x210] sm:$0xf]
    %v188 = vld [vmem:[#allocation2 + $0x214] sm:$0xf]
    %v189 = vld [vmem:[#allocation2 + $0x218] sm:$0xf]
    %v190 = vld [vmem:[#allocation2 + $0x21c] sm:$0xf]
    %v191 = vld [vmem:[#allocation2 + $0x220] sm:$0xf]
    %v192 = vld [vmem:[#allocation2 + $0x224] sm:$0xf]
    %v193 = vld [vmem:[#allocation2 + $0x228] sm:$0xf]
    %v194 = vld [vmem:[#allocation2 + $0x22c] sm:$0xf]
    %v195 = vld [vmem:[#allocation2 + $0x230] sm:$0xf]
    %v196 = vld [vmem:[#allocation2 + $0x234] sm:$0xf]
    %v197 = vld [vmem:[#allocation2 + $0x238] sm:$0xf]
    %v198 = vld [vmem:[#allocation2 + $0x23c] sm:$0xf]
    %v199 = vld [vmem:[#allocation5] sm:$0xf]
    %v200 = vld [vmem:[#allocation5 + $0x4] sm:$0xf]
    %v201 = vld [vmem:[#allocation5 + $0x8] sm:$0xf]
    %v202 = vld [vmem:[#allocation5 + $0xc] sm:$0x1]
    %v347 = vunpack.c.l.b16 %v55
    %v348 = vunpack.c.l.b16 %v56
    %v349 = vunpack.c.l.b16 %v57
    %v350 = vunpack.c.l.b16 %v58
    %v351 = vunpack.c.l.b16 %v59
    %v352 = vunpack.c.l.b16 %v60
    %v353 = vunpack.c.l.b16 %v61
    %v354 = vunpack.c.l.b16 %v62
    %v355 = vunpack.c.l.b16 %v63
    %v356 = vunpack.c.l.b16 %v64
    %v357 = vunpack.c.l.b16 %v65
    %v358 = vunpack.c.l.b16 %v66
    %v359 = vunpack.c.l.b16 %v67
    %v360 = vunpack.c.l.b16 %v68
    %v361 = vunpack.c.l.b16 %v69
    %v362 = vunpack.c.l.b16 %v70
    %v363 = vunpack.c.l.b16 %v71
    %v364 = vunpack.c.l.b16 %v72
    %v365 = vunpack.c.l.b16 %v73
    %v366 = vunpack.c.l.b16 %v74
    %v367 = vunpack.c.l.b16 %v75
    %v368 = vunpack.c.l.b16 %v76
    %v369 = vunpack.c.l.b16 %v77
    %v370 = vunpack.c.l.b16 %v78
    %v371 = vunpack.c.l.b16 %v79
    %v372 = vunpack.c.l.b16 %v80
    %v373 = vunpack.c.l.b16 %v81
    %v374 = vunpack.c.l.b16 %v82
    %v375 = vunpack.c.l.b16 %v83
    %v376 = vunpack.c.l.b16 %v84
    %v377 = vunpack.c.l.b16 %v85
    %v378 = vunpack.c.l.b16 %v86
    %v379 = vunpack.c.l.b16 %v87
    %v380 = vunpack.c.l.b16 %v88
    %v381 = vunpack.c.l.b16 %v89
    %v382 = vunpack.c.l.b16 %v90
    %v383 = vunpack.c.l.b16 %v91
    %v384 = vunpack.c.l.b16 %v92
    %v385 = vunpack.c.l.b16 %v93
    %v386 = vunpack.c.l.b16 %v94
    %v387 = vunpack.c.l.b16 %v95
    %v388 = vunpack.c.l.b16 %v96
    %v389 = vunpack.c.l.b16 %v97
    %v390 = vunpack.c.l.b16 %v98
    %v391 = vunpack.c.l.b16 %v99
    %v392 = vunpack.c.l.b16 %v100
    %v393 = vunpack.c.l.b16 %v101
    %v394 = vunpack.c.l.b16 %v102
    %v395 = vunpack.c.l.b16 %v103
    %v396 = vunpack.c.l.b16 %v104
    %v397 = vunpack.c.l.b16 %v105
    %v398 = vunpack.c.l.b16 %v106
    %v399 = vunpack.c.l.b16 %v107
    %v400 = vunpack.c.l.b16 %v108
    %v401 = vunpack.c.l.b16 %v109
    %v402 = vunpack.c.l.b16 %v110
    %v403 = vunpack.c.l.b16 %v111
    %v404 = vunpack.c.l.b16 %v112
    %v405 = vunpack.c.l.b16 %v113
    %v406 = vunpack.c.l.b16 %v114
    %v407 = vunpack.c.l.b16 %v115
    %v408 = vunpack.c.l.b16 %v116
    %v409 = vunpack.c.l.b16 %v117
    %v410 = vunpack.c.l.b16 %v118
    %v411 = vunpack.c.l.b16 %v119
    %v412 = vunpack.c.l.b16 %v120
    %v413 = vunpack.c.l.b16 %v121
    %v414 = vunpack.c.l.b16 %v122
    %v415 = vunpack.c.l.b16 %v123
    %v416 = vunpack.c.l.b16 %v124
    %v417 = vunpack.c.l.b16 %v125
    %v418 = vunpack.c.l.b16 %v126
    %v419 = vunpack.c.l.b16 %v127
    %v420 = vunpack.c.l.b16 %v128
    %v421 = vunpack.c.l.b16 %v129
    %v422 = vunpack.c.l.b16 %v130
    %v423 = vunpack.c.l.b16 %v131
    %v424 = vunpack.c.l.b16 %v132
    %v425 = vunpack.c.l.b16 %v133
    %v426 = vunpack.c.l.b16 %v134
    %v427 = vunpack.c.l.b16 %v135
    %v428 = vunpack.c.l.b16 %v136
    %v429 = vunpack.c.l.b16 %v137
    %v430 = vunpack.c.l.b16 %v138
    %v431 = vunpack.c.l.b16 %v139
    %v432 = vunpack.c.l.b16 %v140
    %v433 = vunpack.c.l.b16 %v141
    %v434 = vunpack.c.l.b16 %v142
    %v435 = vunpack.c.l.b16 %v143
    %v436 = vunpack.c.l.b16 %v144
    %v437 = vunpack.c.l.b16 %v145
    %v438 = vunpack.c.l.b16 %v146
    %v439 = vunpack.c.l.b16 %v147
    %v440 = vunpack.c.l.b16 %v148
    %v441 = vunpack.c.l.b16 %v149
    %v442 = vunpack.c.l.b16 %v150
    %v443 = vunpack.c.l.b16 %v151
    %v444 = vunpack.c.l.b16 %v152
    %v445 = vunpack.c.l.b16 %v153
    %v446 = vunpack.c.l.b16 %v154
    %v447 = vunpack.c.l.b16 %v155
    %v448 = vunpack.c.l.b16 %v156
    %v449 = vunpack.c.l.b16 %v157
    %v450 = vunpack.c.l.b16 %v158
    %v451 = vunpack.c.l.b16 %v159
    %v452 = vunpack.c.l.b16 %v160
    %v453 = vunpack.c.l.b16 %v161
    %v454 = vunpack.c.l.b16 %v162
    %v455 = vunpack.c.l.b16 %v163
    %v456 = vunpack.c.l.b16 %v164
    %v457 = vunpack.c.l.b16 %v165
    %v458 = vunpack.c.l.b16 %v166
    %v459 = vunpack.c.l.b16 %v167
    %v460 = vunpack.c.l.b16 %v168
    %v461 = vunpack.c.l.b16 %v169
    %v462 = vunpack.c.l.b16 %v170
    %v463 = vunpack.c.l.b16 %v171
    %v464 = vunpack.c.l.b16 %v172
    %v465 = vunpack.c.l.b16 %v173
    %v466 = vunpack.c.l.b16 %v174
    %v467 = vunpack.c.l.b16 %v175
    %v468 = vunpack.c.l.b16 %v176
    %v469 = vunpack.c.l.b16 %v177
    %v470 = vunpack.c.l.b16 %v178
    %v471 = vunpack.c.l.b16 %v179
    %v472 = vunpack.c.l.b16 %v180
    %v473 = vunpack.c.l.b16 %v181
    %v474 = vunpack.c.l.b16 %v182
    %v475 = vunpack.c.l.b16 %v183
    %v476 = vunpack.c.l.b16 %v184
    %v477 = vunpack.c.l.b16 %v185
    %v478 = vunpack.c.l.b16 %v186
    %v479 = vunpack.c.l.b16 %v187
    %v480 = vunpack.c.l.b16 %v188
    %v481 = vunpack.c.l.b16 %v189
    %v482 = vunpack.c.l.b16 %v190
    %v483 = vunpack.c.l.b16 %v191
    %v484 = vunpack.c.l.b16 %v192
    %v485 = vunpack.c.l.b16 %v193
    %v486 = vunpack.c.l.b16 %v194
    %v487 = vunpack.c.l.b16 %v195
    %v488 = vunpack.c.l.b16 %v196
    %v489 = vunpack.c.l.b16 %v197
    %v490 = vunpack.c.l.b16 %v198
    %v491 = vpack.c.b16 %v348, %v347
    %v492 = vpack.c.b16 %v350, %v349
    %v493 = vpack.c.b16 %v352, %v351
    %v494 = vpack.c.b16 %v354, %v353
    %v495 = vpack.c.b16 %v356, %v355
    %v496 = vpack.c.b16 %v358, %v357
    %v497 = vpack.c.b16 %v360, %v359
    %v498 = vpack.c.b16 %v362, %v361
    %v499 = vpack.c.b16 %v364, %v363
    %v500 = vpack.c.b16 %v366, %v365
    %v501 = vpack.c.b16 %v368, %v367
    %v502 = vpack.c.b16 %v370, %v369
    %v503 = vpack.c.b16 %v372, %v371
    %v504 = vpack.c.b16 %v374, %v373
    %v505 = vpack.c.b16 %v376, %v375
    %v506 = vpack.c.b16 %v378, %v377
    %v507 = vpack.c.b16 %v380, %v379
    %v508 = vpack.c.b16 %v382, %v381
    %v509 = vpack.c.b16 %v384, %v383
    %v510 = vpack.c.b16 %v386, %v385
    %v511 = vpack.c.b16 %v388, %v387
    %v512 = vpack.c.b16 %v390, %v389
    %v513 = vpack.c.b16 %v392, %v391
    %v514 = vpack.c.b16 %v394, %v393
    %v515 = vpack.c.b16 %v396, %v395
    %v516 = vpack.c.b16 %v398, %v397
    %v517 = vpack.c.b16 %v400, %v399
    %v518 = vpack.c.b16 %v402, %v401
    %v519 = vpack.c.b16 %v404, %v403
    %v520 = vpack.c.b16 %v406, %v405
    %v521 = vpack.c.b16 %v408, %v407
    %v522 = vpack.c.b16 %v410, %v409
    %v523 = vpack.c.b16 %v412, %v411
    %v524 = vpack.c.b16 %v414, %v413
    %v525 = vpack.c.b16 %v416, %v415
    %v526 = vpack.c.b16 %v418, %v417
    %v527 = vpack.c.b16 %v420, %v419
    %v528 = vpack.c.b16 %v422, %v421
    %v529 = vpack.c.b16 %v424, %v423
    %v530 = vpack.c.b16 %v426, %v425
    %v531 = vpack.c.b16 %v428, %v427
    %v532 = vpack.c.b16 %v430, %v429
    %v533 = vpack.c.b16 %v432, %v431
    %v534 = vpack.c.b16 %v434, %v433
    %v535 = vpack.c.b16 %v436, %v435
    %v536 = vpack.c.b16 %v438, %v437
    %v537 = vpack.c.b16 %v440, %v439
    %v538 = vpack.c.b16 %v442, %v441
    %v539 = vpack.c.b16 %v444, %v443
    %v540 = vpack.c.b16 %v446, %v445
    %v541 = vpack.c.b16 %v448, %v447
    %v542 = vpack.c.b16 %v450, %v449
    %v543 = vpack.c.b16 %v452, %v451
    %v544 = vpack.c.b16 %v454, %v453
    %v545 = vpack.c.b16 %v456, %v455
    %v546 = vpack.c.b16 %v458, %v457
    %v547 = vpack.c.b16 %v460, %v459
    %v548 = vpack.c.b16 %v462, %v461
    %v549 = vpack.c.b16 %v464, %v463
    %v550 = vpack.c.b16 %v466, %v465
    %v551 = vpack.c.b16 %v468, %v467
    %v552 = vpack.c.b16 %v470, %v469
    %v553 = vpack.c.b16 %v472, %v471
    %v554 = vpack.c.b16 %v474, %v473
    %v555 = vpack.c.b16 %v476, %v475
    %v556 = vpack.c.b16 %v478, %v477
    %v557 = vpack.c.b16 %v480, %v479
    %v558 = vpack.c.b16 %v482, %v481
    %v559 = vpack.c.b16 %v484, %v483
    %v560 = vpack.c.b16 %v486, %v485
    %v561 = vpack.c.b16 %v488, %v487
    %v562 = vpack.c.b16 %v490, %v489
    %v567 = vunpack.c.l.b16 %v199
    %v568 = vunpack.c.l.b16 %v200
    %v569 = vunpack.c.l.b16 %v201
    %v570 = vunpack.c.l.b16 %v202
    %v571 = vpack.c.b16 %v568, %v567
    %v572 = vpack.c.b16 %v570, %v569
    %vm574 = vcmask 203776
    %v576 = vsel %vm574, %v491, 0
    %v579 = vsel %vm574, %v492, 0
    %v582 = vsel %vm574, %v493, 0
    %v585 = vsel %vm574, %v494, 0
    %v588 = vsel %vm574, %v495, 0
    %v591 = vsel %vm574, %v496, 0
    %v594 = vsel %vm574, %v497, 0
    %v597 = vsel %vm574, %v498, 0
    %v600 = vsel %vm574, %v499, 0
    %v603 = vsel %vm574, %v500, 0
    %v606 = vsel %vm574, %v501, 0
    %v609 = vsel %vm574, %v502, 0
    %v612 = vsel %vm574, %v503, 0
    %v615 = vsel %vm574, %v504, 0
    %v618 = vsel %vm574, %v505, 0
    %v621 = vsel %vm574, %v506, 0
    %v624 = vsel %vm574, %v507, 0
    %v627 = vsel %vm574, %v508, 0
    %v630 = vsel %vm574, %v509, 0
    %v633 = vsel %vm574, %v510, 0
    %v636 = vsel %vm574, %v511, 0
    %v639 = vsel %vm574, %v512, 0
    %v642 = vsel %vm574, %v513, 0
    %v645 = vsel %vm574, %v514, 0
    %v648 = vsel %vm574, %v515, 0
    %v651 = vsel %vm574, %v516, 0
    %v654 = vsel %vm574, %v517, 0
    %v657 = vsel %vm574, %v518, 0
    %v660 = vsel %vm574, %v519, 0
    %v663 = vsel %vm574, %v520, 0
    %v666 = vsel %vm574, %v521, 0
    %v669 = vsel %vm574, %v522, 0
    %v672 = vsel %vm574, %v523, 0
    %v675 = vsel %vm574, %v524, 0
    %v678 = vsel %vm574, %v525, 0
    %v681 = vsel %vm574, %v526, 0
    %v684 = vsel %vm574, %v527, 0
    %v687 = vsel %vm574, %v528, 0
    %v690 = vsel %vm574, %v529, 0
    %v693 = vsel %vm574, %v530, 0
    %v696 = vsel %vm574, %v531, 0
    %v699 = vsel %vm574, %v532, 0
    %v702 = vsel %vm574, %v533, 0
    %v705 = vsel %vm574, %v534, 0
    %v708 = vsel %vm574, %v535, 0
    %v711 = vsel %vm574, %v536, 0
    %v714 = vsel %vm574, %v537, 0
    %v717 = vsel %vm574, %v538, 0
    %v720 = vsel %vm574, %v539, 0
    %v723 = vsel %vm574, %v540, 0
    %v726 = vsel %vm574, %v541, 0
    %v729 = vsel %vm574, %v542, 0
    %v732 = vsel %vm574, %v543, 0
    %v735 = vsel %vm574, %v544, 0
    %v738 = vsel %vm574, %v545, 0
    %v741 = vsel %vm574, %v546, 0
    %v744 = vsel %vm574, %v547, 0
    %v747 = vsel %vm574, %v548, 0
    %v750 = vsel %vm574, %v549, 0
    %v753 = vsel %vm574, %v550, 0
    %v756 = vsel %vm574, %v551, 0
    %v759 = vsel %vm574, %v552, 0
    %v762 = vsel %vm574, %v553, 0
    %v765 = vsel %vm574, %v554, 0
    %v768 = vsel %vm574, %v555, 0
    %v771 = vsel %vm574, %v556, 0
    %v774 = vsel %vm574, %v557, 0
    %v777 = vsel %vm574, %v558, 0
    %v780 = vsel %vm574, %v559, 0
    %v783 = vsel %vm574, %v560, 0
    %v786 = vsel %vm574, %v561, 0
    %v789 = vsel %vm574, %v562, 0
    %vm791 = vcmask 1043456
    %vm792 = vcmask 1044480
    %v793 = vsel %vm791, 4294967295, 65535
    %v794 = vsel %vm792, %v793, 0
    %v796 = vand.u32 %v572, %v794
    %798 = vmatprep.subr.bf16.mxu0 0
    %799 = vmatpush1.bf16.msra.mxu0 %v571
    %800 = vmatprep.subr.bf16.mxu0 0
    %801 = vmatpush1.bf16.msra.mxu0 %v796
    %802 = vmatprep.subr.bf16.mxu0 0
    %803 = vmatpush1.bf16.msra.mxu0 0
    %804 = vmatprep.subr.bf16.mxu0 0
    %805 = vmatpush1.bf16.msra.mxu0 0
    %806 = vmatprep.subr.bf16.mxu0 0
    %807 = vmatpush1.bf16.msra.mxu0 0
    %808 = vmatprep.subr.bf16.mxu0 0
    %809 = vmatpush1.bf16.msra.mxu0 0
    %810 = vmatprep.subr.bf16.mxu0 0
    %811 = vmatpush1.bf16.msra.mxu0 0
    %812 = vmatprep.subr.bf16.mxu0 0
    %813 = vmatpush1.bf16.msra.mxu0 0
    %814 = vmatprep.subr.bf16.mxu0 0
    %815 = vmatpush1.bf16.msra.mxu0 0
    %816 = vmatprep.subr.bf16.mxu0 0
    %817 = vmatpush1.bf16.msra.mxu0 0
    %818 = vmatprep.subr.bf16.mxu0 0
    %819 = vmatpush1.bf16.msra.mxu0 0
    %820 = vmatprep.subr.bf16.mxu0 0
    %821 = vmatpush1.bf16.msra.mxu0 0
    %822 = vmatprep.subr.bf16.mxu0 0
    %823 = vmatpush1.bf16.msra.mxu0 0
    %824 = vmatprep.subr.bf16.mxu0 0
    %825 = vmatpush1.bf16.msra.mxu0 0
    %826 = vmatprep.subr.bf16.mxu0 0
    %827 = vmatpush1.bf16.msra.mxu0 0
    %828 = vmatprep.subr.bf16.mxu0 0
    %829 = vmatpush1.bf16.msra.mxu0 0
    %830 = vmatprep.mubr.bf16.mxu0 0
    %831 = vmatmul.mubr.bf16.gmra.mrb[0].mxu0 %v576
    %v832 = vpop.f32.mrb[0].mxu0
    %v833 = vadd.f32 0.0, %v832
    %v834 = vpop.f32.mrb[0].mxu0
    %v835 = vpop.f32.mrb[0].mxu0
    %v836 = vadd.f32 0.0, %v835
    %v837 = vpop.f32.mrb[0].mxu0
    %838 = vmatprep.mubr.bf16.mxu0 0
    %839 = vmatmul.mubr.bf16.gmra.mrb[0].mxu0 %v579
    %v840 = vpop.f32.mrb[0].mxu0
    %v841 = vadd.f32 0.0, %v840
    %v842 = vpop.f32.mrb[0].mxu0
    %v843 = vpop.f32.mrb[0].mxu0
    %v844 = vadd.f32 0.0, %v843
    %v845 = vpop.f32.mrb[0].mxu0
    %846 = vmatprep.mubr.bf16.mxu0 0
    %847 = vmatmul.mubr.bf16.gmra.mrb[0].mxu0 %v582
    %v848 = vpop.f32.mrb[0].mxu0
    %v849 = vadd.f32 0.0, %v848
    %v850 = vpop.f32.mrb[0].mxu0
    %v851 = vpop.f32.mrb[0].mxu0
    %v852 = vadd.f32 0.0, %v851
    %v853 = vpop.f32.mrb[0].mxu0
    %854 = vmatprep.mubr.bf16.mxu0 0
    %855 = vmatmul.mubr.bf16.gmra.mrb[0].mxu0 %v585
    %v856 = vpop.f32.mrb[0].mxu0
    %v857 = vadd.f32 0.0, %v856
    %v858 = vpop.f32.mrb[0].mxu0
    %v859 = vpop.f32.mrb[0].mxu0
    %v860 = vadd.f32 0.0, %v859
    %v861 = vpop.f32.mrb[0].mxu0
    %862 = vmatprep.mubr.bf16.mxu0 0
    %863 = vmatmul.mubr.bf16.gmra.mrb[0].mxu0 %v588
    %v864 = vpop.f32.mrb[0].mxu0
    %v865 = vadd.f32 0.0, %v864
    %v866 = vpop.f32.mrb[0].mxu0
    %v867 = vpop.f32.mrb[0].mxu0
    %v868 = vadd.f32 0.0, %v867
    %v869 = vpop.f32.mrb[0].mxu0
    %870 = vmatprep.mubr.bf16.mxu0 0
    %871 = vmatmul.mubr.bf16.gmra.mrb[0].mxu0 %v591
    %v872 = vpop.f32.mrb[0].mxu0
    %v873 = vadd.f32 0.0, %v872
    %v874 = vpop.f32.mrb[0].mxu0
    %v875 = vpop.f32.mrb[0].mxu0
    %v876 = vadd.f32 0.0, %v875
    %v877 = vpop.f32.mrb[0].mxu0
    %878 = vmatprep.mubr.bf16.mxu0 0
    %879 = vmatmul.mubr.bf16.gmra.mrb[0].mxu0 %v594
    %v880 = vpop.f32.mrb[0].mxu0
    %v881 = vadd.f32 0.0, %v880
    %v882 = vpop.f32.mrb[0].mxu0
    %v883 = vpop.f32.mrb[0].mxu0
    %v884 = vadd.f32 0.0, %v883
    %v885 = vpop.f32.mrb[0].mxu0
    %886 = vmatprep.mubr.bf16.mxu0 0
    %887 = vmatmul.mubr.bf16.gmra.mrb[0].mxu0 %v597
    %v888 = vpop.f32.mrb[0].mxu0
    %v889 = vadd.f32 0.0, %v888
    %v890 = vpop.f32.mrb[0].mxu0
    %v891 = vpop.f32.mrb[0].mxu0
    %v892 = vadd.f32 0.0, %v891
    %v893 = vpop.f32.mrb[0].mxu0
    %894 = vmatprep.mubr.bf16.mxu0 0
    %895 = vmatmul.mubr.bf16.gmra.mrb[0].mxu0 %v600
    %v896 = vpop.f32.mrb[0].mxu0
    %v897 = vadd.f32 0.0, %v896
    %v898 = vpop.f32.mrb[0].mxu0
    %v899 = vpop.f32.mrb[0].mxu0
    %v900 = vadd.f32 0.0, %v899
    %v901 = vpop.f32.mrb[0].mxu0
    %902 = vmatprep.mubr.bf16.mxu0 0
    %903 = vmatmul.mubr.bf16.gmra.mrb[0].mxu0 %v603
    %v904 = vpop.f32.mrb[0].mxu0
    %v905 = vadd.f32 0.0, %v904
    %v906 = vpop.f32.mrb[0].mxu0
    %v907 = vpop.f32.mrb[0].mxu0
    %v908 = vadd.f32 0.0, %v907
    %v909 = vpop.f32.mrb[0].mxu0
    %910 = vmatprep.mubr.bf16.mxu0 0
    %911 = vmatmul.mubr.bf16.gmra.mrb[0].mxu0 %v606
    %v912 = vpop.f32.mrb[0].mxu0
    %v913 = vadd.f32 0.0, %v912
    %v914 = vpop.f32.mrb[0].mxu0
    %v915 = vpop.f32.mrb[0].mxu0
    %v916 = vadd.f32 0.0, %v915
    %v917 = vpop.f32.mrb[0].mxu0
    %918 = vmatprep.mubr.bf16.mxu0 0
    %919 = vmatmul.mubr.bf16.gmra.mrb[0].mxu0 %v609
    %v920 = vpop.f32.mrb[0].mxu0
    %v921 = vadd.f32 0.0, %v920
    %v922 = vpop.f32.mrb[0].mxu0
    %v923 = vpop.f32.mrb[0].mxu0
    %v924 = vadd.f32 0.0, %v923
    %v925 = vpop.f32.mrb[0].mxu0
    %926 = vmatprep.mubr.bf16.mxu0 0
    %927 = vmatmul.mubr.bf16.gmra.mrb[0].mxu0 %v612
    %v928 = vpop.f32.mrb[0].mxu0
    %v929 = vadd.f32 0.0, %v928
    %v930 = vpop.f32.mrb[0].mxu0
    %v931 = vpop.f32.mrb[0].mxu0
    %v932 = vadd.f32 0.0, %v931
    %v933 = vpop.f32.mrb[0].mxu0
    %934 = vmatprep.mubr.bf16.mxu0 0
    %935 = vmatmul.mubr.bf16.gmra.mrb[0].mxu0 %v615
    %v936 = vpop.f32.mrb[0].mxu0
    %v937 = vadd.f32 0.0, %v936
    %v938 = vpop.f32.mrb[0].mxu0
    %v939 = vpop.f32.mrb[0].mxu0
    %v940 = vadd.f32 0.0, %v939
    %v941 = vpop.f32.mrb[0].mxu0
    %942 = vmatprep.mubr.bf16.mxu0 0
    %943 = vmatmul.mubr.bf16.gmra.mrb[0].mxu0 %v618
    %v944 = vpop.f32.mrb[0].mxu0
    %v945 = vadd.f32 0.0, %v944
    %v946 = vpop.f32.mrb[0].mxu0
    %v947 = vpop.f32.mrb[0].mxu0
    %v948 = vadd.f32 0.0, %v947
    %v949 = vpop.f32.mrb[0].mxu0
    %950 = vmatprep.mubr.bf16.mxu0 0
    %951 = vmatmul.mubr.bf16.gmra.mrb[0].mxu0 %v621
    %v952 = vpop.f32.mrb[0].mxu0
    %v953 = vadd.f32 0.0, %v952
    %v954 = vpop.f32.mrb[0].mxu0
    %v955 = vpop.f32.mrb[0].mxu0
    %v956 = vadd.f32 0.0, %v955
    %v957 = vpop.f32.mrb[0].mxu0
    %958 = vmatprep.mubr.bf16.mxu0 0
    %959 = vmatmul.mubr.bf16.gmra.mrb[0].mxu0 %v624
    %v960 = vpop.f32.mrb[0].mxu0
    %v961 = vadd.f32 0.0, %v960
    %v962 = vpop.f32.mrb[0].mxu0
    %v963 = vpop.f32.mrb[0].mxu0
    %v964 = vadd.f32 0.0, %v963
    %v965 = vpop.f32.mrb[0].mxu0
    %966 = vmatprep.mubr.bf16.mxu0 0
    %967 = vmatmul.mubr.bf16.gmra.mrb[0].mxu0 %v627
    %v968 = vpop.f32.mrb[0].mxu0
    %v969 = vadd.f32 0.0, %v968
    %v970 = vpop.f32.mrb[0].mxu0
    %v971 = vpop.f32.mrb[0].mxu0
    %v972 = vadd.f32 0.0, %v971
    %v973 = vpop.f32.mrb[0].mxu0
    %974 = vmatprep.mubr.bf16.mxu0 0
    %975 = vmatmul.mubr.bf16.gmra.mrb[0].mxu0 %v630
    %v976 = vpop.f32.mrb[0].mxu0
    %v977 = vadd.f32 0.0, %v976
    %v978 = vpop.f32.mrb[0].mxu0
    %v979 = vpop.f32.mrb[0].mxu0
    %v980 = vadd.f32 0.0, %v979
    %v981 = vpop.f32.mrb[0].mxu0
    %982 = vmatprep.mubr.bf16.mxu0 0
    %983 = vmatmul.mubr.bf16.gmra.mrb[0].mxu0 %v633
    %v984 = vpop.f32.mrb[0].mxu0
    %v985 = vadd.f32 0.0, %v984
    %v986 = vpop.f32.mrb[0].mxu0
    %v987 = vpop.f32.mrb[0].mxu0
    %v988 = vadd.f32 0.0, %v987
    %v989 = vpop.f32.mrb[0].mxu0
    %990 = vmatprep.mubr.bf16.mxu0 0
    %991 = vmatmul.mubr.bf16.gmra.mrb[0].mxu0 %v636
    %v992 = vpop.f32.mrb[0].mxu0
    %v993 = vadd.f32 0.0, %v992
    %v994 = vpop.f32.mrb[0].mxu0
    %v995 = vpop.f32.mrb[0].mxu0
    %v996 = vadd.f32 0.0, %v995
    %v997 = vpop.f32.mrb[0].mxu0
    %998 = vmatprep.mubr.bf16.mxu0 0
    %999 = vmatmul.mubr.bf16.gmra.mrb[0].mxu0 %v639
    %v1000 = vpop.f32.mrb[0].mxu0
    %v1001 = vadd.f32 0.0, %v1000
    %v1002 = vpop.f32.mrb[0].mxu0
    %v1003 = vpop.f32.mrb[0].mxu0
    %v1004 = vadd.f32 0.0, %v1003
    %v1005 = vpop.f32.mrb[0].mxu0
    %1006 = vmatprep.mubr.bf16.mxu0 0
    %1007 = vmatmul.mubr.bf16.gmra.mrb[0].mxu0 %v642
    %v1008 = vpop.f32.mrb[0].mxu0
    %v1009 = vadd.f32 0.0, %v1008
    %v1010 = vpop.f32.mrb[0].mxu0
    %v1011 = vpop.f32.mrb[0].mxu0
    %v1012 = vadd.f32 0.0, %v1011
    %v1013 = vpop.f32.mrb[0].mxu0
    %1014 = vmatprep.mubr.bf16.mxu0 0
    %1015 = vmatmul.mubr.bf16.gmra.mrb[0].mxu0 %v645
    %v1016 = vpop.f32.mrb[0].mxu0
    %v1017 = vadd.f32 0.0, %v1016
    %v1018 = vpop.f32.mrb[0].mxu0
    %v1019 = vpop.f32.mrb[0].mxu0
    %v1020 = vadd.f32 0.0, %v1019
    %v1021 = vpop.f32.mrb[0].mxu0
    %1022 = vmatprep.mubr.bf16.mxu0 0
    %1023 = vmatmul.mubr.bf16.gmra.mrb[0].mxu0 %v648
    %v1024 = vpop.f32.mrb[0].mxu0
    %v1025 = vadd.f32 0.0, %v1024
    %v1026 = vpop.f32.mrb[0].mxu0
    %v1027 = vpop.f32.mrb[0].mxu0
    %v1028 = vadd.f32 0.0, %v1027
    %v1029 = vpop.f32.mrb[0].mxu0
    %1030 = vmatprep.mubr.bf16.mxu0 0
    %1031 = vmatmul.mubr.bf16.gmra.mrb[0].mxu0 %v651
    %v1032 = vpop.f32.mrb[0].mxu0
    %v1033 = vadd.f32 0.0, %v1032
    %v1034 = vpop.f32.mrb[0].mxu0
    %v1035 = vpop.f32.mrb[0].mxu0
    %v1036 = vadd.f32 0.0, %v1035
    %v1037 = vpop.f32.mrb[0].mxu0
    %1038 = vmatprep.mubr.bf16.mxu0 0
    %1039 = vmatmul.mubr.bf16.gmra.mrb[0].mxu0 %v654
    %v1040 = vpop.f32.mrb[0].mxu0
    %v1041 = vadd.f32 0.0, %v1040
    %v1042 = vpop.f32.mrb[0].mxu0
    %v1043 = vpop.f32.mrb[0].mxu0
    %v1044 = vadd.f32 0.0, %v1043
    %v1045 = vpop.f32.mrb[0].mxu0
    %1046 = vmatprep.mubr.bf16.mxu0 0
    %1047 = vmatmul.mubr.bf16.gmra.mrb[0].mxu0 %v657
    %v1048 = vpop.f32.mrb[0].mxu0
    %v1049 = vadd.f32 0.0, %v1048
    %v1050 = vpop.f32.mrb[0].mxu0
    %v1051 = vpop.f32.mrb[0].mxu0
    %v1052 = vadd.f32 0.0, %v1051
    %v1053 = vpop.f32.mrb[0].mxu0
    %1054 = vmatprep.mubr.bf16.mxu0 0
    %1055 = vmatmul.mubr.bf16.gmra.mrb[0].mxu0 %v660
    %v1056 = vpop.f32.mrb[0].mxu0
    %v1057 = vadd.f32 0.0, %v1056
    %v1058 = vpop.f32.mrb[0].mxu0
    %v1059 = vpop.f32.mrb[0].mxu0
    %v1060 = vadd.f32 0.0, %v1059
    %v1061 = vpop.f32.mrb[0].mxu0
    %1062 = vmatprep.mubr.bf16.mxu0 0
    %1063 = vmatmul.mubr.bf16.gmra.mrb[0].mxu0 %v663
    %v1064 = vpop.f32.mrb[0].mxu0
    %v1065 = vadd.f32 0.0, %v1064
    %v1066 = vpop.f32.mrb[0].mxu0
    %v1067 = vpop.f32.mrb[0].mxu0
    %v1068 = vadd.f32 0.0, %v1067
    %v1069 = vpop.f32.mrb[0].mxu0
    %1070 = vmatprep.mubr.bf16.mxu0 0
    %1071 = vmatmul.mubr.bf16.gmra.mrb[0].mxu0 %v666
    %v1072 = vpop.f32.mrb[0].mxu0
    %v1073 = vadd.f32 0.0, %v1072
    %v1074 = vpop.f32.mrb[0].mxu0
    %v1075 = vpop.f32.mrb[0].mxu0
    %v1076 = vadd.f32 0.0, %v1075
    %v1077 = vpop.f32.mrb[0].mxu0
    %1078 = vmatprep.mubr.bf16.mxu0 0
    %1079 = vmatmul.mubr.bf16.gmra.mrb[0].mxu0 %v669
    %v1080 = vpop.f32.mrb[0].mxu0
    %v1081 = vadd.f32 0.0, %v1080
    %v1082 = vpop.f32.mrb[0].mxu0
    %v1083 = vpop.f32.mrb[0].mxu0
    %v1084 = vadd.f32 0.0, %v1083
    %v1085 = vpop.f32.mrb[0].mxu0
    %1086 = vmatprep.mubr.bf16.mxu0 0
    %1087 = vmatmul.mubr.bf16.gmra.mrb[0].mxu0 %v672
    %v1088 = vpop.f32.mrb[0].mxu0
    %v1089 = vadd.f32 0.0, %v1088
    %v1090 = vpop.f32.mrb[0].mxu0
    %v1091 = vpop.f32.mrb[0].mxu0
    %v1092 = vadd.f32 0.0, %v1091
    %v1093 = vpop.f32.mrb[0].mxu0
    %1094 = vmatprep.mubr.bf16.mxu0 0
    %1095 = vmatmul.mubr.bf16.gmra.mrb[0].mxu0 %v675
    %v1096 = vpop.f32.mrb[0].mxu0
    %v1097 = vadd.f32 0.0, %v1096
    %v1098 = vpop.f32.mrb[0].mxu0
    %v1099 = vpop.f32.mrb[0].mxu0
    %v1100 = vadd.f32 0.0, %v1099
    %v1101 = vpop.f32.mrb[0].mxu0
    %1102 = vmatprep.mubr.bf16.mxu0 0
    %1103 = vmatmul.mubr.bf16.gmra.mrb[0].mxu0 %v678
    %v1104 = vpop.f32.mrb[0].mxu0
    %v1105 = vadd.f32 0.0, %v1104
    %v1106 = vpop.f32.mrb[0].mxu0
    %v1107 = vpop.f32.mrb[0].mxu0
    %v1108 = vadd.f32 0.0, %v1107
    %v1109 = vpop.f32.mrb[0].mxu0
    %1110 = vmatprep.mubr.bf16.mxu0 0
    %1111 = vmatmul.mubr.bf16.gmra.mrb[0].mxu0 %v681
    %v1112 = vpop.f32.mrb[0].mxu0
    %v1113 = vadd.f32 0.0, %v1112
    %v1114 = vpop.f32.mrb[0].mxu0
    %v1115 = vpop.f32.mrb[0].mxu0
    %v1116 = vadd.f32 0.0, %v1115
    %v1117 = vpop.f32.mrb[0].mxu0
    %1118 = vmatprep.mubr.bf16.mxu0 0
    %1119 = vmatmul.mubr.bf16.gmra.mrb[0].mxu0 %v684
    %v1120 = vpop.f32.mrb[0].mxu0
    %v1121 = vadd.f32 0.0, %v1120
    %v1122 = vpop.f32.mrb[0].mxu0
    %v1123 = vpop.f32.mrb[0].mxu0
    %v1124 = vadd.f32 0.0, %v1123
    %v1125 = vpop.f32.mrb[0].mxu0
    %1126 = vmatprep.mubr.bf16.mxu0 0
    %1127 = vmatmul.mubr.bf16.gmra.mrb[0].mxu0 %v687
    %v1128 = vpop.f32.mrb[0].mxu0
    %v1129 = vadd.f32 0.0, %v1128
    %v1130 = vpop.f32.mrb[0].mxu0
    %v1131 = vpop.f32.mrb[0].mxu0
    %v1132 = vadd.f32 0.0, %v1131
    %v1133 = vpop.f32.mrb[0].mxu0
    %1134 = vmatprep.mubr.bf16.mxu0 0
    %1135 = vmatmul.mubr.bf16.gmra.mrb[0].mxu0 %v690
    %v1136 = vpop.f32.mrb[0].mxu0
    %v1137 = vadd.f32 0.0, %v1136
    %v1138 = vpop.f32.mrb[0].mxu0
    %v1139 = vpop.f32.mrb[0].mxu0
    %v1140 = vadd.f32 0.0, %v1139
    %v1141 = vpop.f32.mrb[0].mxu0
    %1142 = vmatprep.mubr.bf16.mxu0 0
    %1143 = vmatmul.mubr.bf16.gmra.mrb[0].mxu0 %v693
    %v1144 = vpop.f32.mrb[0].mxu0
    %v1145 = vadd.f32 0.0, %v1144
    %v1146 = vpop.f32.mrb[0].mxu0
    %v1147 = vpop.f32.mrb[0].mxu0
    %v1148 = vadd.f32 0.0, %v1147
    %v1149 = vpop.f32.mrb[0].mxu0
    %1150 = vmatprep.mubr.bf16.mxu0 0
    %1151 = vmatmul.mubr.bf16.gmra.mrb[0].mxu0 %v696
    %v1152 = vpop.f32.mrb[0].mxu0
    %v1153 = vadd.f32 0.0, %v1152
    %v1154 = vpop.f32.mrb[0].mxu0
    %v1155 = vpop.f32.mrb[0].mxu0
    %v1156 = vadd.f32 0.0, %v1155
    %v1157 = vpop.f32.mrb[0].mxu0
    %1158 = vmatprep.mubr.bf16.mxu0 0
    %1159 = vmatmul.mubr.bf16.gmra.mrb[0].mxu0 %v699
    %v1160 = vpop.f32.mrb[0].mxu0
    %v1161 = vadd.f32 0.0, %v1160
    %v1162 = vpop.f32.mrb[0].mxu0
    %v1163 = vpop.f32.mrb[0].mxu0
    %v1164 = vadd.f32 0.0, %v1163
    %v1165 = vpop.f32.mrb[0].mxu0
    %1166 = vmatprep.mubr.bf16.mxu0 0
    %1167 = vmatmul.mubr.bf16.gmra.mrb[0].mxu0 %v702
    %v1168 = vpop.f32.mrb[0].mxu0
    %v1169 = vadd.f32 0.0, %v1168
    %v1170 = vpop.f32.mrb[0].mxu0
    %v1171 = vpop.f32.mrb[0].mxu0
    %v1172 = vadd.f32 0.0, %v1171
    %v1173 = vpop.f32.mrb[0].mxu0
    %1174 = vmatprep.mubr.bf16.mxu0 0
    %1175 = vmatmul.mubr.bf16.gmra.mrb[0].mxu0 %v705
    %v1176 = vpop.f32.mrb[0].mxu0
    %v1177 = vadd.f32 0.0, %v1176
    %v1178 = vpop.f32.mrb[0].mxu0
    %v1179 = vpop.f32.mrb[0].mxu0
    %v1180 = vadd.f32 0.0, %v1179
    %v1181 = vpop.f32.mrb[0].mxu0
    %1182 = vmatprep.mubr.bf16.mxu0 0
    %1183 = vmatmul.mubr.bf16.gmra.mrb[0].mxu0 %v708
    %v1184 = vpop.f32.mrb[0].mxu0
    %v1185 = vadd.f32 0.0, %v1184
    %v1186 = vpop.f32.mrb[0].mxu0
    %v1187 = vpop.f32.mrb[0].mxu0
    %v1188 = vadd.f32 0.0, %v1187
    %v1189 = vpop.f32.mrb[0].mxu0
    %1190 = vmatprep.mubr.bf16.mxu0 0
    %1191 = vmatmul.mubr.bf16.gmra.mrb[0].mxu0 %v711
    %v1192 = vpop.f32.mrb[0].mxu0
    %v1193 = vadd.f32 0.0, %v1192
    %v1194 = vpop.f32.mrb[0].mxu0
    %v1195 = vpop.f32.mrb[0].mxu0
    %v1196 = vadd.f32 0.0, %v1195
    %v1197 = vpop.f32.mrb[0].mxu0
    %1198 = vmatprep.mubr.bf16.mxu0 0
    %1199 = vmatmul.mubr.bf16.gmra.mrb[0].mxu0 %v714
    %v1200 = vpop.f32.mrb[0].mxu0
    %v1201 = vadd.f32 0.0, %v1200
    %v1202 = vpop.f32.mrb[0].mxu0
    %v1203 = vpop.f32.mrb[0].mxu0
    %v1204 = vadd.f32 0.0, %v1203
    %v1205 = vpop.f32.mrb[0].mxu0
    %1206 = vmatprep.mubr.bf16.mxu0 0
    %1207 = vmatmul.mubr.bf16.gmra.mrb[0].mxu0 %v717
    %v1208 = vpop.f32.mrb[0].mxu0
    %v1209 = vadd.f32 0.0, %v1208
    %v1210 = vpop.f32.mrb[0].mxu0
    %v1211 = vpop.f32.mrb[0].mxu0
    %v1212 = vadd.f32 0.0, %v1211
    %v1213 = vpop.f32.mrb[0].mxu0
    %1214 = vmatprep.mubr.bf16.mxu0 0
    %1215 = vmatmul.mubr.bf16.gmra.mrb[0].mxu0 %v720
    %v1216 = vpop.f32.mrb[0].mxu0
    %v1217 = vadd.f32 0.0, %v1216
    %v1218 = vpop.f32.mrb[0].mxu0
    %v1219 = vpop.f32.mrb[0].mxu0
    %v1220 = vadd.f32 0.0, %v1219
    %v1221 = vpop.f32.mrb[0].mxu0
    %1222 = vmatprep.mubr.bf16.mxu0 0
    %1223 = vmatmul.mubr.bf16.gmra.mrb[0].mxu0 %v723
    %v1224 = vpop.f32.mrb[0].mxu0
    %v1225 = vadd.f32 0.0, %v1224
    %v1226 = vpop.f32.mrb[0].mxu0
    %v1227 = vpop.f32.mrb[0].mxu0
    %v1228 = vadd.f32 0.0, %v1227
    %v1229 = vpop.f32.mrb[0].mxu0
    %1230 = vmatprep.mubr.bf16.mxu0 0
    %1231 = vmatmul.mubr.bf16.gmra.mrb[0].mxu0 %v726
    %v1232 = vpop.f32.mrb[0].mxu0
    %v1233 = vadd.f32 0.0, %v1232
    %v1234 = vpop.f32.mrb[0].mxu0
    %v1235 = vpop.f32.mrb[0].mxu0
    %v1236 = vadd.f32 0.0, %v1235
    %v1237 = vpop.f32.mrb[0].mxu0
    %1238 = vmatprep.mubr.bf16.mxu0 0
    %1239 = vmatmul.mubr.bf16.gmra.mrb[0].mxu0 %v729
    %v1240 = vpop.f32.mrb[0].mxu0
    %v1241 = vadd.f32 0.0, %v1240
    %v1242 = vpop.f32.mrb[0].mxu0
    %v1243 = vpop.f32.mrb[0].mxu0
    %v1244 = vadd.f32 0.0, %v1243
    %v1245 = vpop.f32.mrb[0].mxu0
    %1246 = vmatprep.mubr.bf16.mxu0 0
    %1247 = vmatmul.mubr.bf16.gmra.mrb[0].mxu0 %v732
    %v1248 = vpop.f32.mrb[0].mxu0
    %v1249 = vadd.f32 0.0, %v1248
    %v1250 = vpop.f32.mrb[0].mxu0
    %v1251 = vpop.f32.mrb[0].mxu0
    %v1252 = vadd.f32 0.0, %v1251
    %v1253 = vpop.f32.mrb[0].mxu0
    %1254 = vmatprep.mubr.bf16.mxu0 0
    %1255 = vmatmul.mubr.bf16.gmra.mrb[0].mxu0 %v735
    %v1256 = vpop.f32.mrb[0].mxu0
    %v1257 = vadd.f32 0.0, %v1256
    %v1258 = vpop.f32.mrb[0].mxu0
    %v1259 = vpop.f32.mrb[0].mxu0
    %v1260 = vadd.f32 0.0, %v1259
    %v1261 = vpop.f32.mrb[0].mxu0
    %1262 = vmatprep.mubr.bf16.mxu0 0
    %1263 = vmatmul.mubr.bf16.gmra.mrb[0].mxu0 %v738
    %v1264 = vpop.f32.mrb[0].mxu0
    %v1265 = vadd.f32 0.0, %v1264
    %v1266 = vpop.f32.mrb[0].mxu0
    %v1267 = vpop.f32.mrb[0].mxu0
    %v1268 = vadd.f32 0.0, %v1267
    %v1269 = vpop.f32.mrb[0].mxu0
    %1270 = vmatprep.mubr.bf16.mxu0 0
    %1271 = vmatmul.mubr.bf16.gmra.mrb[0].mxu0 %v741
    %v1272 = vpop.f32.mrb[0].mxu0
    %v1273 = vadd.f32 0.0, %v1272
    %v1274 = vpop.f32.mrb[0].mxu0
    %v1275 = vpop.f32.mrb[0].mxu0
    %v1276 = vadd.f32 0.0, %v1275
    %v1277 = vpop.f32.mrb[0].mxu0
    %1278 = vmatprep.mubr.bf16.mxu0 0
    %1279 = vmatmul.mubr.bf16.gmra.mrb[0].mxu0 %v744
    %v1280 = vpop.f32.mrb[0].mxu0
    %v1281 = vadd.f32 0.0, %v1280
    %v1282 = vpop.f32.mrb[0].mxu0
    %v1283 = vpop.f32.mrb[0].mxu0
    %v1284 = vadd.f32 0.0, %v1283
    %v1285 = vpop.f32.mrb[0].mxu0
    %1286 = vmatprep.mubr.bf16.mxu0 0
    %1287 = vmatmul.mubr.bf16.gmra.mrb[0].mxu0 %v747
    %v1288 = vpop.f32.mrb[0].mxu0
    %v1289 = vadd.f32 0.0, %v1288
    %v1290 = vpop.f32.mrb[0].mxu0
    %v1291 = vpop.f32.mrb[0].mxu0
    %v1292 = vadd.f32 0.0, %v1291
    %v1293 = vpop.f32.mrb[0].mxu0
    %1294 = vmatprep.mubr.bf16.mxu0 0
    %1295 = vmatmul.mubr.bf16.gmra.mrb[0].mxu0 %v750
    %v1296 = vpop.f32.mrb[0].mxu0
    %v1297 = vadd.f32 0.0, %v1296
    %v1298 = vpop.f32.mrb[0].mxu0
    %v1299 = vpop.f32.mrb[0].mxu0
    %v1300 = vadd.f32 0.0, %v1299
    %v1301 = vpop.f32.mrb[0].mxu0
    %1302 = vmatprep.mubr.bf16.mxu0 0
    %1303 = vmatmul.mubr.bf16.gmra.mrb[0].mxu0 %v753
    %v1304 = vpop.f32.mrb[0].mxu0
    %v1305 = vadd.f32 0.0, %v1304
    %v1306 = vpop.f32.mrb[0].mxu0
    %v1307 = vpop.f32.mrb[0].mxu0
    %v1308 = vadd.f32 0.0, %v1307
    %v1309 = vpop.f32.mrb[0].mxu0
    %1310 = vmatprep.mubr.bf16.mxu0 0
    %1311 = vmatmul.mubr.bf16.gmra.mrb[0].mxu0 %v756
    %v1312 = vpop.f32.mrb[0].mxu0
    %v1313 = vadd.f32 0.0, %v1312
    %v1314 = vpop.f32.mrb[0].mxu0
    %v1315 = vpop.f32.mrb[0].mxu0
    %v1316 = vadd.f32 0.0, %v1315
    %v1317 = vpop.f32.mrb[0].mxu0
    %1318 = vmatprep.mubr.bf16.mxu0 0
    %1319 = vmatmul.mubr.bf16.gmra.mrb[0].mxu0 %v759
    %v1320 = vpop.f32.mrb[0].mxu0
    %v1321 = vadd.f32 0.0, %v1320
    %v1322 = vpop.f32.mrb[0].mxu0
    %v1323 = vpop.f32.mrb[0].mxu0
    %v1324 = vadd.f32 0.0, %v1323
    %v1325 = vpop.f32.mrb[0].mxu0
    %1326 = vmatprep.mubr.bf16.mxu0 0
    %1327 = vmatmul.mubr.bf16.gmra.mrb[0].mxu0 %v762
    %v1328 = vpop.f32.mrb[0].mxu0
    %v1329 = vadd.f32 0.0, %v1328
    %v1330 = vpop.f32.mrb[0].mxu0
    %v1331 = vpop.f32.mrb[0].mxu0
    %v1332 = vadd.f32 0.0, %v1331
    %v1333 = vpop.f32.mrb[0].mxu0
    %1334 = vmatprep.mubr.bf16.mxu0 0
    %1335 = vmatmul.mubr.bf16.gmra.mrb[0].mxu0 %v765
    %v1336 = vpop.f32.mrb[0].mxu0
    %v1337 = vadd.f32 0.0, %v1336
    %v1338 = vpop.f32.mrb[0].mxu0
    %v1339 = vpop.f32.mrb[0].mxu0
    %v1340 = vadd.f32 0.0, %v1339
    %v1341 = vpop.f32.mrb[0].mxu0
    %1342 = vmatprep.mubr.bf16.mxu0 0
    %1343 = vmatmul.mubr.bf16.gmra.mrb[0].mxu0 %v768
    %v1344 = vpop.f32.mrb[0].mxu0
    %v1345 = vadd.f32 0.0, %v1344
    %v1346 = vpop.f32.mrb[0].mxu0
    %v1347 = vpop.f32.mrb[0].mxu0
    %v1348 = vadd.f32 0.0, %v1347
    %v1349 = vpop.f32.mrb[0].mxu0
    %1350 = vmatprep.mubr.bf16.mxu0 0
    %1351 = vmatmul.mubr.bf16.gmra.mrb[0].mxu0 %v771
    %v1352 = vpop.f32.mrb[0].mxu0
    %v1353 = vadd.f32 0.0, %v1352
    %v1354 = vpop.f32.mrb[0].mxu0
    %v1355 = vpop.f32.mrb[0].mxu0
    %v1356 = vadd.f32 0.0, %v1355
    %v1357 = vpop.f32.mrb[0].mxu0
    %1358 = vmatprep.mubr.bf16.mxu0 0
    %1359 = vmatmul.mubr.bf16.gmra.mrb[0].mxu0 %v774
    %v1360 = vpop.f32.mrb[0].mxu0
    %v1361 = vadd.f32 0.0, %v1360
    %v1362 = vpop.f32.mrb[0].mxu0
    %v1363 = vpop.f32.mrb[0].mxu0
    %v1364 = vadd.f32 0.0, %v1363
    %v1365 = vpop.f32.mrb[0].mxu0
    %1366 = vmatprep.mubr.bf16.mxu0 0
    %1367 = vmatmul.mubr.bf16.gmra.mrb[0].mxu0 %v777
    %v1368 = vpop.f32.mrb[0].mxu0
    %v1369 = vadd.f32 0.0, %v1368
    %v1370 = vpop.f32.mrb[0].mxu0
    %v1371 = vpop.f32.mrb[0].mxu0
    %v1372 = vadd.f32 0.0, %v1371
    %v1373 = vpop.f32.mrb[0].mxu0
    %1374 = vmatprep.mubr.bf16.mxu0 0
    %1375 = vmatmul.mubr.bf16.gmra.mrb[0].mxu0 %v780
    %v1376 = vpop.f32.mrb[0].mxu0
    %v1377 = vadd.f32 0.0, %v1376
    %v1378 = vpop.f32.mrb[0].mxu0
    %v1379 = vpop.f32.mrb[0].mxu0
    %v1380 = vadd.f32 0.0, %v1379
    %v1381 = vpop.f32.mrb[0].mxu0
    %1382 = vmatprep.mubr.bf16.mxu0 0
    %1383 = vmatmul.mubr.bf16.gmra.mrb[0].mxu0 %v783
    %v1384 = vpop.f32.mrb[0].mxu0
    %v1385 = vadd.f32 0.0, %v1384
    %v1386 = vpop.f32.mrb[0].mxu0
    %v1387 = vpop.f32.mrb[0].mxu0
    %v1388 = vadd.f32 0.0, %v1387
    %v1389 = vpop.f32.mrb[0].mxu0
    %1390 = vmatprep.mubr.bf16.mxu0 0
    %1391 = vmatmul.mubr.bf16.gmra.mrb[0].mxu0 %v786
    %v1392 = vpop.f32.mrb[0].mxu0
    %v1393 = vadd.f32 0.0, %v1392
    %v1394 = vpop.f32.mrb[0].mxu0
    %v1395 = vpop.f32.mrb[0].mxu0
    %v1396 = vadd.f32 0.0, %v1395
    %v1397 = vpop.f32.mrb[0].mxu0
    %1398 = vmatprep.mubr.bf16.mxu0 0
    %1399 = vmatmul.mubr.bf16.gmra.mrb[0].mxu0 %v789
    %v1400 = vpop.f32.mrb[0].mxu0
    %v1401 = vadd.f32 0.0, %v1400
    %v1402 = vpop.f32.mrb[0].mxu0
    %v1403 = vpop.f32.mrb[0].mxu0
    %v1404 = vadd.f32 0.0, %v1403
    %v1405 = vpop.f32.mrb[0].mxu0
    %1406 = vdwg.mxu0
    %v1407 = vmax.f32 %v833, %v977
    %v1408 = vmax.f32 %v1407, %v1121
    %v1409 = vmax.f32 %v1408, %v1265
    %v1410 = vmax.f32 %v836, %v980
    %v1411 = vmax.f32 %v1410, %v1124
    %v1412 = vmax.f32 %v1411, %v1268
    %v1413 = vmax.f32 %v841, %v985
    %v1414 = vmax.f32 %v1413, %v1129
    %v1415 = vmax.f32 %v1414, %v1273
    %v1416 = vmax.f32 %v844, %v988
    %v1417 = vmax.f32 %v1416, %v1132
    %v1418 = vmax.f32 %v1417, %v1276
    %v1419 = vmax.f32 %v849, %v993
    %v1420 = vmax.f32 %v1419, %v1137
    %v1421 = vmax.f32 %v1420, %v1281
    %v1422 = vmax.f32 %v852, %v996
    %v1423 = vmax.f32 %v1422, %v1140
    %v1424 = vmax.f32 %v1423, %v1284
    %v1425 = vmax.f32 %v857, %v1001
    %v1426 = vmax.f32 %v1425, %v1145
    %v1427 = vmax.f32 %v1426, %v1289
    %v1428 = vmax.f32 %v860, %v1004
    %v1429 = vmax.f32 %v1428, %v1148
    %v1430 = vmax.f32 %v1429, %v1292
    %v1431 = vmax.f32 %v865, %v1009
    %v1432 = vmax.f32 %v1431, %v1153
    %v1433 = vmax.f32 %v1432, %v1297
    %v1434 = vmax.f32 %v868, %v1012
    %v1435 = vmax.f32 %v1434, %v1156
    %v1436 = vmax.f32 %v1435, %v1300
    %v1437 = vmax.f32 %v873, %v1017
    %v1438 = vmax.f32 %v1437, %v1161
    %v1439 = vmax.f32 %v1438, %v1305
    %v1440 = vmax.f32 %v876, %v1020
    %v1441 = vmax.f32 %v1440, %v1164
    %v1442 = vmax.f32 %v1441, %v1308
    %v1443 = vmax.f32 %v881, %v1025
    %v1444 = vmax.f32 %v1443, %v1169
    %v1445 = vmax.f32 %v1444, %v1313
    %v1446 = vmax.f32 %v884, %v1028
    %v1447 = vmax.f32 %v1446, %v1172
    %v1448 = vmax.f32 %v1447, %v1316
    %v1449 = vmax.f32 %v889, %v1033
    %v1450 = vmax.f32 %v1449, %v1177
    %v1451 = vmax.f32 %v1450, %v1321
    %v1452 = vmax.f32 %v892, %v1036
    %v1453 = vmax.f32 %v1452, %v1180
    %v1454 = vmax.f32 %v1453, %v1324
    %v1455 = vmax.f32 %v897, %v1041
    %v1456 = vmax.f32 %v1455, %v1185
    %v1457 = vmax.f32 %v1456, %v1329
    %v1458 = vmax.f32 %v900, %v1044
    %v1459 = vmax.f32 %v1458, %v1188
    %v1460 = vmax.f32 %v1459, %v1332
    %v1461 = vmax.f32 %v905, %v1049
    %v1462 = vmax.f32 %v1461, %v1193
    %v1463 = vmax.f32 %v1462, %v1337
    %v1464 = vmax.f32 %v908, %v1052
    %v1465 = vmax.f32 %v1464, %v1196
    %v1466 = vmax.f32 %v1465, %v1340
    %v1467 = vmax.f32 %v913, %v1057
    %v1468 = vmax.f32 %v1467, %v1201
    %v1469 = vmax.f32 %v1468, %v1345
    %v1470 = vmax.f32 %v916, %v1060
    %v1471 = vmax.f32 %v1470, %v1204
    %v1472 = vmax.f32 %v1471, %v1348
    %v1473 = vmax.f32 %v921, %v1065
    %v1474 = vmax.f32 %v1473, %v1209
    %v1475 = vmax.f32 %v1474, %v1353
    %v1476 = vmax.f32 %v924, %v1068
    %v1477 = vmax.f32 %v1476, %v1212
    %v1478 = vmax.f32 %v1477, %v1356
    %v1479 = vmax.f32 %v929, %v1073
    %v1480 = vmax.f32 %v1479, %v1217
    %v1481 = vmax.f32 %v1480, %v1361
    %v1482 = vmax.f32 %v932, %v1076
    %v1483 = vmax.f32 %v1482, %v1220
    %v1484 = vmax.f32 %v1483, %v1364
    %v1485 = vmax.f32 %v937, %v1081
    %v1486 = vmax.f32 %v1485, %v1225
    %v1487 = vmax.f32 %v1486, %v1369
    %v1488 = vmax.f32 %v940, %v1084
    %v1489 = vmax.f32 %v1488, %v1228
    %v1490 = vmax.f32 %v1489, %v1372
    %v1491 = vmax.f32 %v945, %v1089
    %v1492 = vmax.f32 %v1491, %v1233
    %v1493 = vmax.f32 %v1492, %v1377
    %v1494 = vmax.f32 %v948, %v1092
    %v1495 = vmax.f32 %v1494, %v1236
    %v1496 = vmax.f32 %v1495, %v1380
    %v1497 = vmax.f32 %v953, %v1097
    %v1498 = vmax.f32 %v1497, %v1241
    %v1499 = vmax.f32 %v1498, %v1385
    %v1500 = vmax.f32 %v956, %v1100
    %v1501 = vmax.f32 %v1500, %v1244
    %v1502 = vmax.f32 %v1501, %v1388
    %v1503 = vmax.f32 %v961, %v1105
    %v1504 = vmax.f32 %v1503, %v1249
    %v1505 = vmax.f32 %v1504, %v1393
    %v1506 = vmax.f32 %v964, %v1108
    %v1507 = vmax.f32 %v1506, %v1252
    %v1508 = vmax.f32 %v1507, %v1396
    %v1509 = vmax.f32 %v969, %v1113
    %v1510 = vmax.f32 %v1509, %v1257
    %v1511 = vmax.f32 %v1510, %v1401
    %v1512 = vmax.f32 %v972, %v1116
    %v1513 = vmax.f32 %v1512, %v1260
    %v1514 = vmax.f32 %v1513, %v1404
    %v1515 = vld [vmem:[#allocation7] sm:$0x1]
    %v1517 = vlaneseq
    %v1518 = vshrl.u32 %v1517, 7
    %v1519 = vsub.s32 0, %v1518
    %v1520 = vrot.slane %v1515, %v1519
    %v1522 = vadd.f32 %v1409, %v1520
    %v1523 = vadd.f32 %v1412, %v1520
    %v1524 = vadd.f32 %v1415, %v1520
    %v1525 = vadd.f32 %v1418, %v1520
    %v1526 = vadd.f32 %v1421, %v1520
    %v1527 = vadd.f32 %v1424, %v1520
    %v1528 = vadd.f32 %v1427, %v1520
    %v1529 = vadd.f32 %v1430, %v1520
    %v1530 = vadd.f32 %v1433, %v1520
    %v1531 = vadd.f32 %v1436, %v1520
    %v1532 = vadd.f32 %v1439, %v1520
    %v1533 = vadd.f32 %v1442, %v1520
    %v1534 = vadd.f32 %v1445, %v1520
    %v1535 = vadd.f32 %v1448, %v1520
    %v1536 = vadd.f32 %v1451, %v1520
    %v1537 = vadd.f32 %v1454, %v1520
    %v1538 = vadd.f32 %v1457, %v1520
    %v1539 = vadd.f32 %v1460, %v1520
    %v1540 = vadd.f32 %v1463, %v1520
    %v1541 = vadd.f32 %v1466, %v1520
    %v1542 = vadd.f32 %v1469, %v1520
    %v1543 = vadd.f32 %v1472, %v1520
    %v1544 = vadd.f32 %v1475, %v1520
    %v1545 = vadd.f32 %v1478, %v1520
    %v1546 = vadd.f32 %v1481, %v1520
    %v1547 = vadd.f32 %v1484, %v1520
    %v1548 = vadd.f32 %v1487, %v1520
    %v1549 = vadd.f32 %v1490, %v1520
    %v1550 = vadd.f32 %v1493, %v1520
    %v1551 = vadd.f32 %v1496, %v1520
    %v1552 = vadd.f32 %v1499, %v1520
    %v1553 = vadd.f32 %v1502, %v1520
    %v1554 = vadd.f32 %v1505, %v1520
    %v1555 = vadd.f32 %v1508, %v1520
    %v1556 = vadd.f32 %v1511, %v1520
    %v1557 = vadd.f32 %v1514, %v1520
    %v1558 = vmax.f32 %v1522, 0.0
    %v1559 = vmax.f32 %v1523, 0.0
    %v1560 = vmax.f32 %v1524, 0.0
    %v1561 = vmax.f32 %v1525, 0.0
    %v1562 = vmax.f32 %v1526, 0.0
    %v1563 = vmax.f32 %v1527, 0.0
    %v1564 = vmax.f32 %v1528, 0.0
    %v1565 = vmax.f32 %v1529, 0.0
    %v1566 = vmax.f32 %v1530, 0.0
    %v1567 = vmax.f32 %v1531, 0.0
    %v1568 = vmax.f32 %v1532, 0.0
    %v1569 = vmax.f32 %v1533, 0.0
    %v1570 = vmax.f32 %v1534, 0.0
    %v1571 = vmax.f32 %v1535, 0.0
    %v1572 = vmax.f32 %v1536, 0.0
    %v1573 = vmax.f32 %v1537, 0.0
    %v1574 = vmax.f32 %v1538, 0.0
    %v1575 = vmax.f32 %v1539, 0.0
    %v1576 = vmax.f32 %v1540, 0.0
    %v1577 = vmax.f32 %v1541, 0.0
    %v1578 = vmax.f32 %v1542, 0.0
    %v1579 = vmax.f32 %v1543, 0.0
    %v1580 = vmax.f32 %v1544, 0.0
    %v1581 = vmax.f32 %v1545, 0.0
    %v1582 = vmax.f32 %v1546, 0.0
    %v1583 = vmax.f32 %v1547, 0.0
    %v1584 = vmax.f32 %v1548, 0.0
    %v1585 = vmax.f32 %v1549, 0.0
    %v1586 = vmax.f32 %v1550, 0.0
    %v1587 = vmax.f32 %v1551, 0.0
    %v1588 = vmax.f32 %v1552, 0.0
    %v1589 = vmax.f32 %v1553, 0.0
    %v1590 = vmax.f32 %v1554, 0.0
    %v1591 = vmax.f32 %v1555, 0.0
    %v1592 = vmax.f32 %v1556, 0.0
    %v1593 = vmax.f32 %v1557, 0.0
    %v1594 = vpack.c.bf16 %v1559, %v1558
    %v1595 = vpack.c.bf16 %v1561, %v1560
    %v1596 = vpack.c.bf16 %v1563, %v1562
    %v1597 = vpack.c.bf16 %v1565, %v1564
    %v1598 = vpack.c.bf16 %v1567, %v1566
    %v1599 = vpack.c.bf16 %v1569, %v1568
    %v1600 = vpack.c.bf16 %v1571, %v1570
    %v1601 = vpack.c.bf16 %v1573, %v1572
    %v1602 = vpack.c.bf16 %v1575, %v1574
    %v1603 = vpack.c.bf16 %v1577, %v1576
    %v1604 = vpack.c.bf16 %v1579, %v1578
    %v1605 = vpack.c.bf16 %v1581, %v1580
    %v1606 = vpack.c.bf16 %v1583, %v1582
    %v1607 = vpack.c.bf16 %v1585, %v1584
    %v1608 = vpack.c.bf16 %v1587, %v1586
    %v1609 = vpack.c.bf16 %v1589, %v1588
    %v1610 = vpack.c.bf16 %v1591, %v1590
    %v1611 = vpack.c.bf16 %v1593, %v1592
    %v1630 = vunpack.c.l.b16 %v1594
    %v1631 = vunpack.c.h.b16 %v1594
    %v1632 = vunpack.c.l.b16 %v1595
    %v1633 = vunpack.c.h.b16 %v1595
    %v1634 = vunpack.c.l.b16 %v1596
    %v1635 = vunpack.c.h.b16 %v1596
    %v1636 = vunpack.c.l.b16 %v1597
    %v1637 = vunpack.c.h.b16 %v1597
    %v1638 = vunpack.c.l.b16 %v1598
    %v1639 = vunpack.c.h.b16 %v1598
    %v1640 = vunpack.c.l.b16 %v1599
    %v1641 = vunpack.c.h.b16 %v1599
    %v1642 = vunpack.c.l.b16 %v1600
    %v1643 = vunpack.c.h.b16 %v1600
    %v1644 = vunpack.c.l.b16 %v1601
    %v1645 = vunpack.c.h.b16 %v1601
    %v1646 = vunpack.c.l.b16 %v1602
    %v1647 = vunpack.c.h.b16 %v1602
    %v1648 = vunpack.c.l.b16 %v1603
    %v1649 = vunpack.c.h.b16 %v1603
    %v1650 = vunpack.c.l.b16 %v1604
    %v1651 = vunpack.c.h.b16 %v1604
    %v1652 = vunpack.c.l.b16 %v1605
    %v1653 = vunpack.c.h.b16 %v1605
    %v1654 = vunpack.c.l.b16 %v1606
    %v1655 = vunpack.c.h.b16 %v1606
    %v1656 = vunpack.c.l.b16 %v1607
    %v1657 = vunpack.c.h.b16 %v1607
    %v1658 = vunpack.c.l.b16 %v1608
    %v1659 = vunpack.c.h.b16 %v1608
    %v1660 = vunpack.c.l.b16 %v1609
    %v1661 = vunpack.c.h.b16 %v1609
    %v1662 = vunpack.c.l.b16 %v1610
    %v1663 = vunpack.c.h.b16 %v1610
    %v1664 = vunpack.c.l.b16 %v1611
    %v1665 = vunpack.c.h.b16 %v1611
    %v1666 = vpack.c.b16 %v1630, %v1630
    %v1667 = vpack.c.b16 %v1631, %v1631
    %v1668 = vpack.c.b16 %v1632, %v1632
    %v1669 = vpack.c.b16 %v1633, %v1633
    %v1670 = vpack.c.b16 %v1634, %v1634
    %v1671 = vpack.c.b16 %v1635, %v1635
    %v1672 = vpack.c.b16 %v1636, %v1636
    %v1673 = vpack.c.b16 %v1637, %v1637
    %v1674 = vpack.c.b16 %v1638, %v1638
    %v1675 = vpack.c.b16 %v1639, %v1639
    %v1676 = vpack.c.b16 %v1640, %v1640
    %v1677 = vpack.c.b16 %v1641, %v1641
    %v1678 = vpack.c.b16 %v1642, %v1642
    %v1679 = vpack.c.b16 %v1643, %v1643
    %v1680 = vpack.c.b16 %v1644, %v1644
    %v1681 = vpack.c.b16 %v1645, %v1645
    %v1682 = vpack.c.b16 %v1646, %v1646
    %v1683 = vpack.c.b16 %v1647, %v1647
    %v1684 = vpack.c.b16 %v1648, %v1648
    %v1685 = vpack.c.b16 %v1649, %v1649
    %v1686 = vpack.c.b16 %v1650, %v1650
    %v1687 = vpack.c.b16 %v1651, %v1651
    %v1688 = vpack.c.b16 %v1652, %v1652
    %v1689 = vpack.c.b16 %v1653, %v1653
    %v1690 = vpack.c.b16 %v1654, %v1654
    %v1691 = vpack.c.b16 %v1655, %v1655
    %v1692 = vpack.c.b16 %v1656, %v1656
    %v1693 = vpack.c.b16 %v1657, %v1657
    %v1694 = vpack.c.b16 %v1658, %v1658
    %v1695 = vpack.c.b16 %v1659, %v1659
    %v1696 = vpack.c.b16 %v1660, %v1660
    %v1697 = vpack.c.b16 %v1661, %v1661
    %v1698 = vpack.c.b16 %v1662, %v1662
    %v1699 = vpack.c.b16 %v1663, %v1663
    %v1700 = vpack.c.b16 %v1664, %v1664
    %v1701 = vpack.c.b16 %v1665, %v1665
    %1738 = vst [vmem:[#allocation8] sm:$0xf] %v1666
    %1739 = vst [vmem:[#allocation8 + $0x4] sm:$0xf] %v1667
    %1740 = vst [vmem:[#allocation8 + $0x8] sm:$0xf] %v1668
    %1741 = vst [vmem:[#allocation8 + $0xc] sm:$0xf] %v1669
    %1742 = vst [vmem:[#allocation8 + $0x10] sm:$0xf] %v1670
    %1743 = vst [vmem:[#allocation8 + $0x14] sm:$0xf] %v1671
    %1744 = vst [vmem:[#allocation8 + $0x18] sm:$0xf] %v1672
    %1745 = vst [vmem:[#allocation8 + $0x1c] sm:$0xf] %v1673
    %1746 = vst [vmem:[#allocation8 + $0x20] sm:$0xf] %v1674
    %1747 = vst [vmem:[#allocation8 + $0x24] sm:$0xf] %v1675
    %1748 = vst [vmem:[#allocation8 + $0x28] sm:$0xf] %v1676
    %1749 = vst [vmem:[#allocation8 + $0x2c] sm:$0xf] %v1677
    %1750 = vst [vmem:[#allocation8 + $0x30] sm:$0xf] %v1678
    %1751 = vst [vmem:[#allocation8 + $0x34] sm:$0xf] %v1679
    %1752 = vst [vmem:[#allocation8 + $0x38] sm:$0xf] %v1680
    %1753 = vst [vmem:[#allocation8 + $0x3c] sm:$0xf] %v1681
    %1754 = vst [vmem:[#allocation8 + $0x40] sm:$0xf] %v1682
    %1755 = vst [vmem:[#allocation8 + $0x44] sm:$0xf] %v1683
    %1756 = vst [vmem:[#allocation8 + $0x48] sm:$0xf] %v1684
    %1757 = vst [vmem:[#allocation8 + $0x4c] sm:$0xf] %v1685
    %1758 = vst [vmem:[#allocation8 + $0x50] sm:$0xf] %v1686
    %1759 = vst [vmem:[#allocation8 + $0x54] sm:$0xf] %v1687
    %1760 = vst [vmem:[#allocation8 + $0x58] sm:$0xf] %v1688
    %1761 = vst [vmem:[#allocation8 + $0x5c] sm:$0xf] %v1689
    %1762 = vst [vmem:[#allocation8 + $0x60] sm:$0xf] %v1690
    %1763 = vst [vmem:[#allocation8 + $0x64] sm:$0xf] %v1691
    %1764 = vst [vmem:[#allocation8 + $0x68] sm:$0xf] %v1692
    %1765 = vst [vmem:[#allocation8 + $0x6c] sm:$0xf] %v1693
    %1766 = vst [vmem:[#allocation8 + $0x70] sm:$0xf] %v1694
    %1767 = vst [vmem:[#allocation8 + $0x74] sm:$0xf] %v1695
    %1768 = vst [vmem:[#allocation8 + $0x78] sm:$0xf] %v1696
    %1769 = vst [vmem:[#allocation8 + $0x7c] sm:$0xf] %v1697
    %1770 = vst [vmem:[#allocation8 + $0x80] sm:$0xf] %v1698
    %1771 = vst [vmem:[#allocation8 + $0x84] sm:$0xf] %v1699
    %1772 = vst [vmem:[#allocation8 + $0x88] sm:$0xf] %v1700
    %1773 = vst [vmem:[#allocation8 + $0x8c] sm:$0xf] %v1701
    // Predicated region
    $region26: #{cnn_forward.3} parent=1 // pred_check
      _
    $region27: #{cnn_forward.3} parent=1 // pred_check_branch
      %1775 = sbr.rel (0) target = $region29
    $region28: #{cnn_forward.3} parent=1 // pred_region
      %s1777 = ssub.s32 2304, 2304
      %1778 = vsyncadd [#allocation4], %s1777
      %s1779 = sshll.u32 [#allocation8], 4
      %s1780 = int_to_ptr.vmem [resolvable:$true] %s1779
      %1785 = dma.vmem_to_hbm [thread:$0]  %s1780, 2304, %s3, [#allocation4], 64, 64, 4
    $region29: #{cnn_forward.3} parent=1 // pred_fallthru
      _
    // Predicated region
    $region30: #{cnn_forward.3} parent=1 // pred_check
      _
    $region31: #{cnn_forward.3} parent=1 // pred_check_branch
      %1787 = sbr.rel (0) target = $region33
    $region32: #{cnn_forward.3} parent=1 // pred_region
      %1788 = dma.done [#allocation4], 2304
    $region33: #{cnn_forward.3} parent=1 // pred_fallthru
      _
    %1789 = vsyncpa [#allocation3], 1
    %1790 = vsyncpa [#allocation6], 1
    %1791 = vsyncpa [#allocation4], 1

// kernel: cnn_forward.4
$region0: #{cnn_forward.4}
  #allocation0 [shape = 'u32[]', space=smem, size = 0x4, offset = 0x4, fixed_abs, tag = 'smem constant byte address 0x4 - core index']
  #allocation1 [shape = 'u32[144,128]{1,0:T(1,128)}', space=vmem, size = 0x12000, scoped, tag = 'internal scratch']
  %s0 = inlined_call_operand.hbm [shape: bf16[4,32,250], index: 0, kind: input, shape index: {}]
  %s1 = inlined_call_operand.hbm [shape: bf16[250,128], index: 1, kind: input, shape index: {}]
  %s2 = inlined_call_operand.hbm [shape: f32[1,128], index: 2, kind: input, shape index: {}]
  %s3 = inlined_call_operand.hbm [shape: bf16[32,128], index: 3, kind: output, shape index: {}]
  %s4 = sld [smem:[#allocation0]]
  $region34: #{cnn_forward.4} parent=0
    _
  %s6 = ssub.s32 1, %s4
  %s7 = scalar_select 0, %s6, %s4
  $region1: #{cnn_forward.4} parent=0
    #allocation2 [shape = 'u8[65536]{0}', space=vmem, size = 0x10000, scoped, tag = 'input window, operand 0, single buffered']
    #allocation3 [shape = 's32[1]{0}', space=sflag, size = 0x4, scoped, tag = 'scoped memory for cnn_forward.4']
    #allocation4 [shape = 's32[1]{0}', space=sflag, size = 0x4, scoped, tag = 'scoped memory for cnn_forward.4']
    #allocation5 [shape = 'u8[65536]{0}', space=vmem, size = 0x10000, scoped, tag = 'input window, operand 1, single buffered']
    #allocation6 [shape = 's32[1]{0}', space=sflag, size = 0x4, scoped, tag = 'scoped memory for cnn_forward.4']
    #allocation7 [shape = 'u8[512]{0}', space=vmem, size = 0x400, scoped, tag = 'input window, operand 2, single buffered']
    #allocation8 [shape = 'u8[8192]{0}', space=vmem, size = 0x2000, scoped, tag = 'output window, operand 0, single buffered']
    %8 = vsyncpa [#allocation3], 0
    %9 = vsyncpa [#allocation6], 0
    %10 = vsyncpa [#allocation4], 0
    // Predicated region
    $region2: #{cnn_forward.4} parent=1 // pred_check
      _
    $region3: #{cnn_forward.4} parent=1 // pred_check_branch
      %12 = sbr.rel (0) target = $region5
    $region4: #{cnn_forward.4} parent=1 // pred_region
      %s14 = ssub.s32 2048, 2048
      %15 = vsyncadd [#allocation3], %s14
      %s16 = sshll.u32 [#allocation2], 4
      %s17 = int_to_ptr.vmem [resolvable:$true] %s16
      %22 = dma.hbm_to_vmem [thread:$0]  %s0, 2048, %s17, [#allocation3], 128, 128, 8
    $region5: #{cnn_forward.4} parent=1 // pred_fallthru
      _
    // Predicated region
    $region6: #{cnn_forward.4} parent=1 // pred_check
      _
    $region7: #{cnn_forward.4} parent=1 // pred_check_branch
      %24 = sbr.rel (0) target = $region9
    $region8: #{cnn_forward.4} parent=1 // pred_region
      %s26 = ssub.s32 2048, 2048
      %27 = vsyncadd [#allocation6], %s26
      %s28 = sshll.u32 [#allocation5], 4
      %s29 = int_to_ptr.vmem [resolvable:$true] %s28
      %34 = dma.hbm_to_vmem [thread:$0]  %s1, 2048, %s29, [#allocation6], 64, 64, 4
    $region9: #{cnn_forward.4} parent=1 // pred_fallthru
      _
    // Predicated region
    $region10: #{cnn_forward.4} parent=1 // pred_check
      _
    $region11: #{cnn_forward.4} parent=1 // pred_check_branch
      %36 = sbr.rel (0) target = $region13
    $region12: #{cnn_forward.4} parent=1 // pred_region
      %s38 = ssub.s32 16, 16
      %39 = vsyncadd [#allocation6], %s38
      %s41 = sshll.u32 [#allocation7], 4
      %s42 = int_to_ptr.vmem [resolvable:$true] %s41
      %44 = dma.hbm_to_vmem [thread:$0]  %s2, 16, %s42, [#allocation6]
    $region13: #{cnn_forward.4} parent=1 // pred_fallthru
      _
    // Predicated region
    $region14: #{cnn_forward.4} parent=1 // pred_check
      _
    $region15: #{cnn_forward.4} parent=1 // pred_check_branch
      %46 = sbr.rel (0) target = $region17
    $region16: #{cnn_forward.4} parent=1 // pred_region
      %47 = dma.done [#allocation3], 2048
    $region17: #{cnn_forward.4} parent=1 // pred_fallthru
      _
    // Predicated region
    $region18: #{cnn_forward.4} parent=1 // pred_check
      _
    $region19: #{cnn_forward.4} parent=1 // pred_check_branch
      %49 = sbr.rel (0) target = $region21
    $region20: #{cnn_forward.4} parent=1 // pred_region
      %50 = dma.done [#allocation6], 2048
    $region21: #{cnn_forward.4} parent=1 // pred_fallthru
      _
    // Predicated region
    $region22: #{cnn_forward.4} parent=1 // pred_check
      _
    $region23: #{cnn_forward.4} parent=1 // pred_check_branch
      %52 = sbr.rel (0) target = $region25
    $region24: #{cnn_forward.4} parent=1 // pred_region
      %53 = dma.done [#allocation6], 16
    $region25: #{cnn_forward.4} parent=1 // pred_fallthru
      _
    %v55 = vld [vmem:[#allocation2] sm:$0xff]
    %v56 = vld [vmem:[#allocation2 + $0x8] sm:$0xff]
    %v57 = vld [vmem:[#allocation2 + $0x10] sm:$0xff]
    %v58 = vld [vmem:[#allocation2 + $0x18] sm:$0xff]
    %v59 = vld [vmem:[#allocation2 + $0x20] sm:$0xff]
    %v60 = vld [vmem:[#allocation2 + $0x28] sm:$0xff]
    %v61 = vld [vmem:[#allocation2 + $0x30] sm:$0xff]
    %v62 = vld [vmem:[#allocation2 + $0x38] sm:$0xff]
    %v63 = vld [vmem:[#allocation2 + $0x40] sm:$0xff]
    %v64 = vld [vmem:[#allocation2 + $0x48] sm:$0xff]
    %v65 = vld [vmem:[#allocation2 + $0x50] sm:$0xff]
    %v66 = vld [vmem:[#allocation2 + $0x58] sm:$0xff]
    %v67 = vld [vmem:[#allocation2 + $0x60] sm:$0xff]
    %v68 = vld [vmem:[#allocation2 + $0x68] sm:$0xff]
    %v69 = vld [vmem:[#allocation2 + $0x70] sm:$0xff]
    %v70 = vld [vmem:[#allocation2 + $0x78] sm:$0xff]
    %v71 = vld [vmem:[#allocation5] sm:$0xf]
    %v72 = vld [vmem:[#allocation5 + $0x4] sm:$0xf]
    %v73 = vld [vmem:[#allocation5 + $0x8] sm:$0xf]
    %v74 = vld [vmem:[#allocation5 + $0xc] sm:$0xf]
    %v75 = vld [vmem:[#allocation5 + $0x10] sm:$0xf]
    %v76 = vld [vmem:[#allocation5 + $0x14] sm:$0xf]
    %v77 = vld [vmem:[#allocation5 + $0x18] sm:$0xf]
    %v78 = vld [vmem:[#allocation5 + $0x1c] sm:$0xf]
    %v79 = vld [vmem:[#allocation5 + $0x20] sm:$0xf]
    %v80 = vld [vmem:[#allocation5 + $0x24] sm:$0xf]
    %v81 = vld [vmem:[#allocation5 + $0x28] sm:$0xf]
    %v82 = vld [vmem:[#allocation5 + $0x2c] sm:$0xf]
    %v83 = vld [vmem:[#allocation5 + $0x30] sm:$0xf]
    %v84 = vld [vmem:[#allocation5 + $0x34] sm:$0xf]
    %v85 = vld [vmem:[#allocation5 + $0x38] sm:$0xf]
    %v86 = vld [vmem:[#allocation5 + $0x3c] sm:$0xf]
    %v87 = vld [vmem:[#allocation5 + $0x40] sm:$0xf]
    %v88 = vld [vmem:[#allocation5 + $0x44] sm:$0xf]
    %v89 = vld [vmem:[#allocation5 + $0x48] sm:$0xf]
    %v90 = vld [vmem:[#allocation5 + $0x4c] sm:$0xf]
    %v91 = vld [vmem:[#allocation5 + $0x50] sm:$0xf]
    %v92 = vld [vmem:[#allocation5 + $0x54] sm:$0xf]
    %v93 = vld [vmem:[#allocation5 + $0x58] sm:$0xf]
    %v94 = vld [vmem:[#allocation5 + $0x5c] sm:$0xf]
    %v95 = vld [vmem:[#allocation5 + $0x60] sm:$0xf]
    %v96 = vld [vmem:[#allocation5 + $0x64] sm:$0xf]
    %v97 = vld [vmem:[#allocation5 + $0x68] sm:$0xf]
    %v98 = vld [vmem:[#allocation5 + $0x6c] sm:$0xf]
    %v99 = vld [vmem:[#allocation5 + $0x70] sm:$0xf]
    %v100 = vld [vmem:[#allocation5 + $0x74] sm:$0xf]
    %v101 = vld [vmem:[#allocation5 + $0x78] sm:$0xf]
    %v102 = vld [vmem:[#allocation5 + $0x7c] sm:$0x1]
    %v119 = vunpack.c.l.b16 %v55
    %v120 = vunpack.c.h.b16 %v55
    %v121 = vunpack.c.l.b16 %v56
    %v122 = vunpack.c.h.b16 %v56
    %v123 = vunpack.c.l.b16 %v57
    %v124 = vunpack.c.h.b16 %v57
    %v125 = vunpack.c.l.b16 %v58
    %v126 = vunpack.c.h.b16 %v58
    %v127 = vunpack.c.l.b16 %v59
    %v128 = vunpack.c.h.b16 %v59
    %v129 = vunpack.c.l.b16 %v60
    %v130 = vunpack.c.h.b16 %v60
    %v131 = vunpack.c.l.b16 %v61
    %v132 = vunpack.c.h.b16 %v61
    %v133 = vunpack.c.l.b16 %v62
    %v134 = vunpack.c.h.b16 %v62
    %v135 = vunpack.c.l.b16 %v63
    %v136 = vunpack.c.h.b16 %v63
    %v137 = vunpack.c.l.b16 %v64
    %v138 = vunpack.c.h.b16 %v64
    %v139 = vunpack.c.l.b16 %v65
    %v140 = vunpack.c.h.b16 %v65
    %v141 = vunpack.c.l.b16 %v66
    %v142 = vunpack.c.h.b16 %v66
    %v143 = vunpack.c.l.b16 %v67
    %v144 = vunpack.c.h.b16 %v67
    %v145 = vunpack.c.l.b16 %v68
    %v146 = vunpack.c.h.b16 %v68
    %v147 = vunpack.c.l.b16 %v69
    %v148 = vunpack.c.h.b16 %v69
    %v149 = vunpack.c.l.b16 %v70
    %v150 = vunpack.c.h.b16 %v70
    %v151 = vpack.c.b16 %v121, %v119
    %v152 = vpack.c.b16 %v122, %v120
    %v153 = vpack.c.b16 %v125, %v123
    %v154 = vpack.c.b16 %v126, %v124
    %v155 = vpack.c.b16 %v129, %v127
    %v156 = vpack.c.b16 %v130, %v128
    %v157 = vpack.c.b16 %v133, %v131
    %v158 = vpack.c.b16 %v134, %v132
    %v159 = vpack.c.b16 %v137, %v135
    %v160 = vpack.c.b16 %v138, %v136
    %v161 = vpack.c.b16 %v141, %v139
    %v162 = vpack.c.b16 %v142, %v140
    %v163 = vpack.c.b16 %v145, %v143
    %v164 = vpack.c.b16 %v146, %v144
    %v165 = vpack.c.b16 %v149, %v147
    %v166 = vpack.c.b16 %v150, %v148
    %v207 = vunpack.c.l.b16 %v71
    %v208 = vunpack.c.l.b16 %v72
    %v209 = vunpack.c.l.b16 %v73
    %v210 = vunpack.c.l.b16 %v74
    %v211 = vunpack.c.l.b16 %v75
    %v212 = vunpack.c.l.b16 %v76
    %v213 = vunpack.c.l.b16 %v77
    %v214 = vunpack.c.l.b16 %v78
    %v215 = vunpack.c.l.b16 %v79
    %v216 = vunpack.c.l.b16 %v80
    %v217 = vunpack.c.l.b16 %v81
    %v218 = vunpack.c.l.b16 %v82
    %v219 = vunpack.c.l.b16 %v83
    %v220 = vunpack.c.l.b16 %v84
    %v221 = vunpack.c.l.b16 %v85
    %v222 = vunpack.c.l.b16 %v86
    %v223 = vunpack.c.l.b16 %v87
    %v224 = vunpack.c.l.b16 %v88
    %v225 = vunpack.c.l.b16 %v89
    %v226 = vunpack.c.l.b16 %v90
    %v227 = vunpack.c.l.b16 %v91
    %v228 = vunpack.c.l.b16 %v92
    %v229 = vunpack.c.l.b16 %v93
    %v230 = vunpack.c.l.b16 %v94
    %v231 = vunpack.c.l.b16 %v95
    %v232 = vunpack.c.l.b16 %v96
    %v233 = vunpack.c.l.b16 %v97
    %v234 = vunpack.c.l.b16 %v98
    %v235 = vunpack.c.l.b16 %v99
    %v236 = vunpack.c.l.b16 %v100
    %v237 = vunpack.c.l.b16 %v101
    %v238 = vunpack.c.l.b16 %v102
    %v239 = vpack.c.b16 %v208, %v207
    %v240 = vpack.c.b16 %v210, %v209
    %v241 = vpack.c.b16 %v212, %v211
    %v242 = vpack.c.b16 %v214, %v213
    %v243 = vpack.c.b16 %v216, %v215
    %v244 = vpack.c.b16 %v218, %v217
    %v245 = vpack.c.b16 %v220, %v219
    %v246 = vpack.c.b16 %v222, %v221
    %v247 = vpack.c.b16 %v224, %v223
    %v248 = vpack.c.b16 %v226, %v225
    %v249 = vpack.c.b16 %v228, %v227
    %v250 = vpack.c.b16 %v230, %v229
    %v251 = vpack.c.b16 %v232, %v231
    %v252 = vpack.c.b16 %v234, %v233
    %v253 = vpack.c.b16 %v236, %v235
    %v254 = vpack.c.b16 %v238, %v237
    %vm270 = vcmask 998400
    %v272 = vsel %vm270, %v152, 0
    %v275 = vsel %vm270, %v154, 0
    %v278 = vsel %vm270, %v156, 0
    %v281 = vsel %vm270, %v158, 0
    %v284 = vsel %vm270, %v160, 0
    %v287 = vsel %vm270, %v162, 0
    %v290 = vsel %vm270, %v164, 0
    %v293 = vsel %vm270, %v166, 0
    %vm295 = vcmask 1044480
    %v297 = vsel %vm295, %v254, 0
    %299 = vmatprep.subr.bf16.mxu0 0
    %300 = vmatpush1.bf16.msra.mxu0 %v239
    %301 = vmatprep.subr.bf16.mxu0 0
    %302 = vmatpush1.bf16.msra.mxu0 %v240
    %303 = vmatprep.subr.bf16.mxu0 0
    %304 = vmatpush1.bf16.msra.mxu0 %v241
    %305 = vmatprep.subr.bf16.mxu0 0
    %306 = vmatpush1.bf16.msra.mxu0 %v242
    %307 = vmatprep.subr.bf16.mxu0 0
    %308 = vmatpush1.bf16.msra.mxu0 %v243
    %309 = vmatprep.subr.bf16.mxu0 0
    %310 = vmatpush1.bf16.msra.mxu0 %v244
    %311 = vmatprep.subr.bf16.mxu0 0
    %312 = vmatpush1.bf16.msra.mxu0 %v245
    %313 = vmatprep.subr.bf16.mxu0 0
    %314 = vmatpush1.bf16.msra.mxu0 %v246
    %315 = vmatprep.subr.bf16.mxu0 0
    %316 = vmatpush1.bf16.msra.mxu0 %v247
    %317 = vmatprep.subr.bf16.mxu0 0
    %318 = vmatpush1.bf16.msra.mxu0 %v248
    %319 = vmatprep.subr.bf16.mxu0 0
    %320 = vmatpush1.bf16.msra.mxu0 %v249
    %321 = vmatprep.subr.bf16.mxu0 0
    %322 = vmatpush1.bf16.msra.mxu0 %v250
    %323 = vmatprep.subr.bf16.mxu0 0
    %324 = vmatpush1.bf16.msra.mxu0 %v251
    %325 = vmatprep.subr.bf16.mxu0 0
    %326 = vmatpush1.bf16.msra.mxu0 %v252
    %327 = vmatprep.subr.bf16.mxu0 0
    %328 = vmatpush1.bf16.msra.mxu0 %v253
    %329 = vmatprep.subr.bf16.mxu0 0
    %330 = vmatpush1.bf16.msra.mxu0 %v297
    %331 = vmatprep.mubr.bf16.mxu0 %v272
    %332 = vmatmul.mubr.bf16.gmra.mrb[0].mxu0 %v151
    %v333 = vpop.f32.mrb[0].mxu0
    %v334 = vadd.f32 0.0, %v333
    %v335 = vpop.f32.mrb[0].mxu0
    %v336 = vpop.f32.mrb[0].mxu0
    %v337 = vadd.f32 0.0, %v336
    %v338 = vpop.f32.mrb[0].mxu0
    %339 = vmatprep.mubr.bf16.mxu0 %v275
    %340 = vmatmul.mubr.bf16.gmra.mrb[0].mxu0 %v153
    %v341 = vpop.f32.mrb[0].mxu0
    %v342 = vadd.f32 0.0, %v341
    %v343 = vpop.f32.mrb[0].mxu0
    %v344 = vpop.f32.mrb[0].mxu0
    %v345 = vadd.f32 0.0, %v344
    %v346 = vpop.f32.mrb[0].mxu0
    %347 = vmatprep.mubr.bf16.mxu0 %v278
    %348 = vmatmul.mubr.bf16.gmra.mrb[0].mxu0 %v155
    %v349 = vpop.f32.mrb[0].mxu0
    %v350 = vadd.f32 0.0, %v349
    %v351 = vpop.f32.mrb[0].mxu0
    %v352 = vpop.f32.mrb[0].mxu0
    %v353 = vadd.f32 0.0, %v352
    %v354 = vpop.f32.mrb[0].mxu0
    %355 = vmatprep.mubr.bf16.mxu0 %v281
    %356 = vmatmul.mubr.bf16.gmra.mrb[0].mxu0 %v157
    %v357 = vpop.f32.mrb[0].mxu0
    %v358 = vadd.f32 0.0, %v357
    %v359 = vpop.f32.mrb[0].mxu0
    %v360 = vpop.f32.mrb[0].mxu0
    %v361 = vadd.f32 0.0, %v360
    %v362 = vpop.f32.mrb[0].mxu0
    %363 = vmatprep.mubr.bf16.mxu0 %v284
    %364 = vmatmul.mubr.bf16.gmra.mrb[0].mxu0 %v159
    %v365 = vpop.f32.mrb[0].mxu0
    %v366 = vadd.f32 0.0, %v365
    %v367 = vpop.f32.mrb[0].mxu0
    %v368 = vpop.f32.mrb[0].mxu0
    %v369 = vadd.f32 0.0, %v368
    %v370 = vpop.f32.mrb[0].mxu0
    %371 = vmatprep.mubr.bf16.mxu0 %v287
    %372 = vmatmul.mubr.bf16.gmra.mrb[0].mxu0 %v161
    %v373 = vpop.f32.mrb[0].mxu0
    %v374 = vadd.f32 0.0, %v373
    %v375 = vpop.f32.mrb[0].mxu0
    %v376 = vpop.f32.mrb[0].mxu0
    %v377 = vadd.f32 0.0, %v376
    %v378 = vpop.f32.mrb[0].mxu0
    %379 = vmatprep.mubr.bf16.mxu0 %v290
    %380 = vmatmul.mubr.bf16.gmra.mrb[0].mxu0 %v163
    %v381 = vpop.f32.mrb[0].mxu0
    %v382 = vadd.f32 0.0, %v381
    %v383 = vpop.f32.mrb[0].mxu0
    %v384 = vpop.f32.mrb[0].mxu0
    %v385 = vadd.f32 0.0, %v384
    %v386 = vpop.f32.mrb[0].mxu0
    %387 = vmatprep.mubr.bf16.mxu0 %v293
    %388 = vmatmul.mubr.bf16.gmra.mrb[0].mxu0 %v165
    %v389 = vpop.f32.mrb[0].mxu0
    %v390 = vadd.f32 0.0, %v389
    %v391 = vpop.f32.mrb[0].mxu0
    %v392 = vpop.f32.mrb[0].mxu0
    %v393 = vadd.f32 0.0, %v392
    %v394 = vpop.f32.mrb[0].mxu0
    %395 = vdwg.mxu0
    %v396 = vmax.f32 %v334, %v350
    %v397 = vmax.f32 %v396, %v366
    %v398 = vmax.f32 %v397, %v382
    %v399 = vmax.f32 %v337, %v353
    %v400 = vmax.f32 %v399, %v369
    %v401 = vmax.f32 %v400, %v385
    %v402 = vmax.f32 %v342, %v358
    %v403 = vmax.f32 %v402, %v374
    %v404 = vmax.f32 %v403, %v390
    %v405 = vmax.f32 %v345, %v361
    %v406 = vmax.f32 %v405, %v377
    %v407 = vmax.f32 %v406, %v393
    %v408 = vld [vmem:[#allocation7] sm:$0x1]
    %v410 = vlaneseq
    %v411 = vshrl.u32 %v410, 7
    %v412 = vsub.s32 0, %v411
    %v413 = vrot.slane %v408, %v412
    %v415 = vadd.f32 %v398, %v413
    %v416 = vadd.f32 %v401, %v413
    %v417 = vadd.f32 %v404, %v413
    %v418 = vadd.f32 %v407, %v413
    %v419 = vmax.f32 %v415, 0.0
    %v420 = vmax.f32 %v416, 0.0
    %v421 = vmax.f32 %v417, 0.0
    %v422 = vmax.f32 %v418, 0.0
    %v423 = vpack.c.bf16 %v420, %v419
    %v424 = vpack.c.bf16 %v422, %v421
    %v427 = vunpack.c.l.b16 %v423
    %v428 = vunpack.c.h.b16 %v423
    %v429 = vunpack.c.l.b16 %v424
    %v430 = vunpack.c.h.b16 %v424
    %v431 = vpack.c.b16 %v427, %v427
    %v432 = vpack.c.b16 %v428, %v428
    %v433 = vpack.c.b16 %v429, %v429
    %v434 = vpack.c.b16 %v430, %v430
    %439 = vst [vmem:[#allocation8] sm:$0xf] %v431
    %440 = vst [vmem:[#allocation8 + $0x4] sm:$0xf] %v432
    %441 = vst [vmem:[#allocation8 + $0x8] sm:$0xf] %v433
    %442 = vst [vmem:[#allocation8 + $0xc] sm:$0xf] %v434
    // Predicated region
    $region26: #{cnn_forward.4} parent=1 // pred_check
      _
    $region27: #{cnn_forward.4} parent=1 // pred_check_branch
      %444 = sbr.rel (0) target = $region29
    $region28: #{cnn_forward.4} parent=1 // pred_region
      %s446 = ssub.s32 256, 256
      %447 = vsyncadd [#allocation4], %s446
      %s448 = sshll.u32 [#allocation8], 4
      %s449 = int_to_ptr.vmem [resolvable:$true] %s448
      %454 = dma.vmem_to_hbm [thread:$0]  %s449, 256, %s3, [#allocation4], 64, 64, 4
    $region29: #{cnn_forward.4} parent=1 // pred_fallthru
      _
    // Predicated region
    $region30: #{cnn_forward.4} parent=1 // pred_check
      _
    $region31: #{cnn_forward.4} parent=1 // pred_check_branch
      %456 = sbr.rel (0) target = $region33
    $region32: #{cnn_forward.4} parent=1 // pred_region
      %457 = dma.done [#allocation4], 256
    $region33: #{cnn_forward.4} parent=1 // pred_fallthru
      _
    %458 = vsyncpa [#allocation3], 1
    %459 = vsyncpa [#allocation6], 1
    %460 = vsyncpa [#allocation4], 1

// kernel: cnn_forward.5
$region0: #{cnn_forward.5}
  #allocation0 [shape = 'u32[]', space=smem, size = 0x4, offset = 0x4, fixed_abs, tag = 'smem constant byte address 0x4 - core index']
  #allocation1 [shape = 'u32[144,128]{1,0:T(1,128)}', space=vmem, size = 0x12000, scoped, tag = 'internal scratch']
  %s0 = inlined_call_operand.hbm [shape: bf16[16,320], index: 0, kind: input, shape index: {}]
  %s1 = inlined_call_operand.hbm [shape: bf16[320,50], index: 1, kind: input, shape index: {}]
  %s2 = inlined_call_operand.hbm [shape: f32[1,50], index: 2, kind: input, shape index: {}]
  %s3 = inlined_call_operand.hbm [shape: bf16[50,128], index: 3, kind: input, shape index: {}]
  %s4 = inlined_call_operand.hbm [shape: f32[1,128], index: 4, kind: input, shape index: {}]
  %s5 = inlined_call_operand.hbm [shape: f32[16,128], index: 5, kind: output, shape index: {}]
  %s6 = sld [smem:[#allocation0]]
  $region50: #{cnn_forward.5} parent=0
    _
  %s8 = ssub.s32 1, %s6
  %s9 = scalar_select 0, %s8, %s6
  $region1: #{cnn_forward.5} parent=0
    #allocation2 [shape = 'u8[12288]{0}', space=vmem, size = 0x3000, scoped, tag = 'input window, operand 0, single buffered']
    #allocation3 [shape = 's32[1]{0}', space=sflag, size = 0x4, scoped, tag = 'scoped memory for cnn_forward.5']
    #allocation4 [shape = 's32[1]{0}', space=sflag, size = 0x4, scoped, tag = 'scoped memory for cnn_forward.5']
    #allocation5 [shape = 'u8[81920]{0}', space=vmem, size = 0x14000, scoped, tag = 'input window, operand 1, single buffered']
    #allocation6 [shape = 's32[1]{0}', space=sflag, size = 0x4, scoped, tag = 'scoped memory for cnn_forward.5']
    #allocation7 [shape = 'u8[512]{0}', space=vmem, size = 0x400, scoped, tag = 'input window, operand 2, single buffered']
    #allocation8 [shape = 'u8[14336]{0}', space=vmem, size = 0x3800, scoped, tag = 'input window, operand 3, single buffered']
    #allocation9 [shape = 's32[1]{0}', space=sflag, size = 0x4, scoped, tag = 'scoped memory for cnn_forward.5']
    #allocation10 [shape = 'u8[512]{0}', space=vmem, size = 0x400, scoped, tag = 'input window, operand 4, single buffered']
    #allocation11 [shape = 'u8[8192]{0}', space=vmem, size = 0x2000, scoped, tag = 'output window, operand 0, single buffered']
    %10 = vsyncpa [#allocation3], 0
    %11 = vsyncpa [#allocation6], 0
    %12 = vsyncpa [#allocation9], 0
    %13 = vsyncpa [#allocation4], 0
    // Predicated region
    $region2: #{cnn_forward.5} parent=1 // pred_check
      _
    $region3: #{cnn_forward.5} parent=1 // pred_check_branch
      %15 = sbr.rel (0) target = $region5
    $region4: #{cnn_forward.5} parent=1 // pred_region
      %s17 = ssub.s32 384, 384
      %18 = vsyncadd [#allocation3], %s17
      %s19 = sshll.u32 [#allocation2], 4
      %s20 = int_to_ptr.vmem [resolvable:$true] %s19
      %25 = dma.hbm_to_vmem [thread:$0]  %s0, 384, %s20, [#allocation3], 192, 192, 12
    $region5: #{cnn_forward.5} parent=1 // pred_fallthru
      _
    // Predicated region
    $region6: #{cnn_forward.5} parent=1 // pred_check
      _
    $region7: #{cnn_forward.5} parent=1 // pred_check_branch
      %27 = sbr.rel (0) target = $region9
    $region8: #{cnn_forward.5} parent=1 // pred_region
      %s29 = ssub.s32 2560, 2560
      %30 = vsyncadd [#allocation6], %s29
      %s31 = sshll.u32 [#allocation5], 4
      %s32 = int_to_ptr.vmem [resolvable:$true] %s31
      %37 = dma.hbm_to_vmem [thread:$0]  %s1, 2560, %s32, [#allocation6], 64, 64, 4
    $region9: #{cnn_forward.5} parent=1 // pred_fallthru
      _
    // Predicated region
    $region10: #{cnn_forward.5} parent=1 // pred_check
      _
    $region11: #{cnn_forward.5} parent=1 // pred_check_branch
      %39 = sbr.rel (0) target = $region13
    $region12: #{cnn_forward.5} parent=1 // pred_region
      %s41 = ssub.s32 16, 16
      %42 = vsyncadd [#allocation6], %s41
      %s44 = sshll.u32 [#allocation7], 4
      %s45 = int_to_ptr.vmem [resolvable:$true] %s44
      %47 = dma.hbm_to_vmem [thread:$0]  %s2, 16, %s45, [#allocation6]
    $region13: #{cnn_forward.5} parent=1 // pred_fallthru
      _
    // Predicated region
    $region14: #{cnn_forward.5} parent=1 // pred_check
      _
    $region15: #{cnn_forward.5} parent=1 // pred_check_branch
      %49 = sbr.rel (0) target = $region17
    $region16: #{cnn_forward.5} parent=1 // pred_region
      %s51 = ssub.s32 448, 448
      %52 = vsyncadd [#allocation9], %s51
      %s53 = sshll.u32 [#allocation8], 4
      %s54 = int_to_ptr.vmem [resolvable:$true] %s53
      %59 = dma.hbm_to_vmem [thread:$0]  %s3, 448, %s54, [#allocation9], 64, 64, 4
    $region17: #{cnn_forward.5} parent=1 // pred_fallthru
      _
    // Predicated region
    $region18: #{cnn_forward.5} parent=1 // pred_check
      _
    $region19: #{cnn_forward.5} parent=1 // pred_check_branch
      %61 = sbr.rel (0) target = $region21
    $region20: #{cnn_forward.5} parent=1 // pred_region
      %s63 = ssub.s32 16, 16
      %64 = vsyncadd [#allocation9], %s63
      %s66 = sshll.u32 [#allocation10], 4
      %s67 = int_to_ptr.vmem [resolvable:$true] %s66
      %69 = dma.hbm_to_vmem [thread:$0]  %s4, 16, %s67, [#allocation9]
    $region21: #{cnn_forward.5} parent=1 // pred_fallthru
      _
    // Predicated region
    $region22: #{cnn_forward.5} parent=1 // pred_check
      _
    $region23: #{cnn_forward.5} parent=1 // pred_check_branch
      %71 = sbr.rel (0) target = $region25
    $region24: #{cnn_forward.5} parent=1 // pred_region
      %72 = dma.done [#allocation3], 384
    $region25: #{cnn_forward.5} parent=1 // pred_fallthru
      _
    // Predicated region
    $region26: #{cnn_forward.5} parent=1 // pred_check
      _
    $region27: #{cnn_forward.5} parent=1 // pred_check_branch
      %74 = sbr.rel (0) target = $region29
    $region28: #{cnn_forward.5} parent=1 // pred_region
      %75 = dma.done [#allocation6], 2560
    $region29: #{cnn_forward.5} parent=1 // pred_fallthru
      _
    // Predicated region
    $region30: #{cnn_forward.5} parent=1 // pred_check
      _
    $region31: #{cnn_forward.5} parent=1 // pred_check_branch
      %77 = sbr.rel (0) target = $region33
    $region32: #{cnn_forward.5} parent=1 // pred_region
      %78 = dma.done [#allocation6], 16
    $region33: #{cnn_forward.5} parent=1 // pred_fallthru
      _
    // Predicated region
    $region34: #{cnn_forward.5} parent=1 // pred_check
      _
    $region35: #{cnn_forward.5} parent=1 // pred_check_branch
      %80 = sbr.rel (0) target = $region37
    $region36: #{cnn_forward.5} parent=1 // pred_region
      %81 = dma.done [#allocation9], 448
    $region37: #{cnn_forward.5} parent=1 // pred_fallthru
      _
    // Predicated region
    $region38: #{cnn_forward.5} parent=1 // pred_check
      _
    $region39: #{cnn_forward.5} parent=1 // pred_check_branch
      %83 = sbr.rel (0) target = $region41
    $region40: #{cnn_forward.5} parent=1 // pred_region
      %84 = dma.done [#allocation9], 16
    $region41: #{cnn_forward.5} parent=1 // pred_fallthru
      _
    %v86 = vld [vmem:[#allocation2] sm:$0xff]
    %v87 = vld [vmem:[#allocation2 + $0x8] sm:$0xf]
    %v88 = vld [vmem:[#allocation2 + $0xc] sm:$0xff]
    %v89 = vld [vmem:[#allocation2 + $0x14] sm:$0xf]
    %v90 = vld [vmem:[#allocation5] sm:$0xf]
    %v91 = vld [vmem:[#allocation5 + $0x4] sm:$0xf]
    %v92 = vld [vmem:[#allocation5 + $0x8] sm:$0xf]
    %v93 = vld [vmem:[#allocation5 + $0xc] sm:$0xf]
    %v94 = vld [vmem:[#allocation5 + $0x10] sm:$0xf]
    %v95 = vld [vmem:[#allocation5 + $0x14] sm:$0xf]
    %v96 = vld [vmem:[#allocation5 + $0x18] sm:$0xf]
    %v97 = vld [vmem:[#allocation5 + $0x1c] sm:$0xf]
    %v98 = vld [vmem:[#allocation5 + $0x20] sm:$0xf]
    %v99 = vld [vmem:[#allocation5 + $0x24] sm:$0xf]
    %v100 = vld [vmem:[#allocation5 + $0x28] sm:$0xf]
    %v101 = vld [vmem:[#allocation5 + $0x2c] sm:$0xf]
    %v102 = vld [vmem:[#allocation5 + $0x30] sm:$0xf]
    %v103 = vld [vmem:[#allocation5 + $0x34] sm:$0xf]
    %v104 = vld [vmem:[#allocation5 + $0x38] sm:$0xf]
    %v105 = vld [vmem:[#allocation5 + $0x3c] sm:$0xf]
    %v106 = vld [vmem:[#allocation5 + $0x40] sm:$0xf]
    %v107 = vld [vmem:[#allocation5 + $0x44] sm:$0xf]
    %v108 = vld [vmem:[#allocation5 + $0x48] sm:$0xf]
    %v109 = vld [vmem:[#allocation5 + $0x4c] sm:$0xf]
    %v110 = vld [vmem:[#allocation5 + $0x50] sm:$0xf]
    %v111 = vld [vmem:[#allocation5 + $0x54] sm:$0xf]
    %v112 = vld [vmem:[#allocation5 + $0x58] sm:$0xf]
    %v113 = vld [vmem:[#allocation5 + $0x5c] sm:$0xf]
    %v114 = vld [vmem:[#allocation5 + $0x60] sm:$0xf]
    %v115 = vld [vmem:[#allocation5 + $0x64] sm:$0xf]
    %v116 = vld [vmem:[#allocation5 + $0x68] sm:$0xf]
    %v117 = vld [vmem:[#allocation5 + $0x6c] sm:$0xf]
    %v118 = vld [vmem:[#allocation5 + $0x70] sm:$0xf]
    %v119 = vld [vmem:[#allocation5 + $0x74] sm:$0xf]
    %v120 = vld [vmem:[#allocation5 + $0x78] sm:$0xf]
    %v121 = vld [vmem:[#allocation5 + $0x7c] sm:$0xf]
    %v122 = vld [vmem:[#allocation5 + $0x80] sm:$0xf]
    %v123 = vld [vmem:[#allocation5 + $0x84] sm:$0xf]
    %v124 = vld [vmem:[#allocation5 + $0x88] sm:$0xf]
    %v125 = vld [vmem:[#allocation5 + $0x8c] sm:$0xf]
    %v126 = vld [vmem:[#allocation5 + $0x90] sm:$0xf]
    %v127 = vld [vmem:[#allocation5 + $0x94] sm:$0xf]
    %v128 = vld [vmem:[#allocation5 + $0x98] sm:$0xf]
    %v129 = vld [vmem:[#allocation5 + $0x9c] sm:$0xf]
    %v130 = vld [vmem:[#allocation7] sm:$0x1]
    %v132 = vlaneseq
    %v133 = vshrl.u32 %v132, 7
    %v134 = vsub.s32 0, %v133
    %v135 = vrot.slane %v130, %v134
    %v141 = vunpack.c.l.b16 %v86
    %v142 = vunpack.c.h.b16 %v86
    %v143 = vunpack.c.l.b16 %v87
    %v144 = vunpack.c.l.b16 %v88
    %v145 = vunpack.c.h.b16 %v88
    %v146 = vunpack.c.l.b16 %v89
    %v147 = vpack.c.b16 %v144, %v141
    %v148 = vpack.c.b16 %v145, %v142
    %v149 = vpack.c.b16 %v146, %v143
    %v192 = vunpack.c.l.b16 %v90
    %v193 = vunpack.c.l.b16 %v91
    %v194 = vunpack.c.l.b16 %v92
    %v195 = vunpack.c.l.b16 %v93
    %v196 = vunpack.c.l.b16 %v94
    %v197 = vunpack.c.l.b16 %v95
    %v198 = vunpack.c.l.b16 %v96
    %v199 = vunpack.c.l.b16 %v97
    %v200 = vunpack.c.l.b16 %v98
    %v201 = vunpack.c.l.b16 %v99
    %v202 = vunpack.c.l.b16 %v100
    %v203 = vunpack.c.l.b16 %v101
    %v204 = vunpack.c.l.b16 %v102
    %v205 = vunpack.c.l.b16 %v103
    %v206 = vunpack.c.l.b16 %v104
    %v207 = vunpack.c.l.b16 %v105
    %v208 = vunpack.c.l.b16 %v106
    %v209 = vunpack.c.l.b16 %v107
    %v210 = vunpack.c.l.b16 %v108
    %v211 = vunpack.c.l.b16 %v109
    %v212 = vunpack.c.l.b16 %v110
    %v213 = vunpack.c.l.b16 %v111
    %v214 = vunpack.c.l.b16 %v112
    %v215 = vunpack.c.l.b16 %v113
    %v216 = vunpack.c.l.b16 %v114
    %v217 = vunpack.c.l.b16 %v115
    %v218 = vunpack.c.l.b16 %v116
    %v219 = vunpack.c.l.b16 %v117
    %v220 = vunpack.c.l.b16 %v118
    %v221 = vunpack.c.l.b16 %v119
    %v222 = vunpack.c.l.b16 %v120
    %v223 = vunpack.c.l.b16 %v121
    %v224 = vunpack.c.l.b16 %v122
    %v225 = vunpack.c.l.b16 %v123
    %v226 = vunpack.c.l.b16 %v124
    %v227 = vunpack.c.l.b16 %v125
    %v228 = vunpack.c.l.b16 %v126
    %v229 = vunpack.c.l.b16 %v127
    %v230 = vunpack.c.l.b16 %v128
    %v231 = vunpack.c.l.b16 %v129
    %v232 = vpack.c.b16 %v193, %v192
    %v233 = vpack.c.b16 %v195, %v194
    %v234 = vpack.c.b16 %v197, %v196
    %v235 = vpack.c.b16 %v199, %v198
    %v236 = vpack.c.b16 %v201, %v200
    %v237 = vpack.c.b16 %v203, %v202
    %v238 = vpack.c.b16 %v205, %v204
    %v239 = vpack.c.b16 %v207, %v206
    %v240 = vpack.c.b16 %v209, %v208
    %v241 = vpack.c.b16 %v211, %v210
    %v242 = vpack.c.b16 %v213, %v212
    %v243 = vpack.c.b16 %v215, %v214
    %v244 = vpack.c.b16 %v217, %v216
    %v245 = vpack.c.b16 %v219, %v218
    %v246 = vpack.c.b16 %v221, %v220
    %v247 = vpack.c.b16 %v223, %v222
    %v248 = vpack.c.b16 %v225, %v224
    %v249 = vpack.c.b16 %v227, %v226
    %v250 = vpack.c.b16 %v229, %v228
    %v251 = vpack.c.b16 %v231, %v230
    %vm272 = vcmask 523264
    %v274 = vsel %vm272, %v149, 0
    %276 = vmatprep.subr.bf16.mxu0 0
    %277 = vmatpush1.bf16.msra.mxu0 %v232
    %278 = vmatprep.subr.bf16.mxu0 0
    %279 = vmatpush1.bf16.msra.mxu0 %v233
    %280 = vmatprep.subr.bf16.mxu0 0
    %281 = vmatpush1.bf16.msra.mxu0 %v234
    %282 = vmatprep.subr.bf16.mxu0 0
    %283 = vmatpush1.bf16.msra.mxu0 %v235
    %284 = vmatprep.subr.bf16.mxu0 0
    %285 = vmatpush1.bf16.msra.mxu0 %v236
    %286 = vmatprep.subr.bf16.mxu0 0
    %287 = vmatpush1.bf16.msra.mxu0 %v237
    %288 = vmatprep.subr.bf16.mxu0 0
    %289 = vmatpush1.bf16.msra.mxu0 %v238
    %290 = vmatprep.subr.bf16.mxu0 0
    %291 = vmatpush1.bf16.msra.mxu0 %v239
    %292 = vmatprep.subr.bf16.mxu0 0
    %293 = vmatpush1.bf16.msra.mxu0 %v240
    %294 = vmatprep.subr.bf16.mxu0 0
    %295 = vmatpush1.bf16.msra.mxu0 %v241
    %296 = vmatprep.subr.bf16.mxu0 0
    %297 = vmatpush1.bf16.msra.mxu0 %v242
    %298 = vmatprep.subr.bf16.mxu0 0
    %299 = vmatpush1.bf16.msra.mxu0 %v243
    %300 = vmatprep.subr.bf16.mxu0 0
    %301 = vmatpush1.bf16.msra.mxu0 %v244
    %302 = vmatprep.subr.bf16.mxu0 0
    %303 = vmatpush1.bf16.msra.mxu0 %v245
    %304 = vmatprep.subr.bf16.mxu0 0
    %305 = vmatpush1.bf16.msra.mxu0 %v246
    %306 = vmatprep.subr.bf16.mxu0 0
    %307 = vmatpush1.bf16.msra.mxu0 %v247
    %308 = vmatprep.mubr.bf16.mxu0 %v148
    %309 = vmatmul.mubr.bf16.gmra.mrb[0].mxu0 %v147
    %v310 = vpop.f32.mrb[0].mxu0
    %v311 = vadd.f32 %v135, %v310
    %v312 = vpop.f32.mrb[0].mxu0
    %v313 = vpop.f32.mrb[0].mxu0
    %v314 = vadd.f32 %v135, %v313
    %v315 = vpop.f32.mrb[0].mxu0
    %316 = vdwg.mxu0
    %317 = vmatprep.subr.bf16.mxu0 0
    %318 = vmatpush1.bf16.msra.mxu0 %v248
    %319 = vmatprep.subr.bf16.mxu0 0
    %320 = vmatpush1.bf16.msra.mxu0 %v249
    %321 = vmatprep.subr.bf16.mxu0 0
    %322 = vmatpush1.bf16.msra.mxu0 %v250
    %323 = vmatprep.subr.bf16.mxu0 0
    %324 = vmatpush1.bf16.msra.mxu0 %v251
    %325 = vmatprep.subr.bf16.mxu0 0
    %326 = vmatpush1.bf16.msra.mxu0 0
    %327 = vmatprep.subr.bf16.mxu0 0
    %328 = vmatpush1.bf16.msra.mxu0 0
    %329 = vmatprep.subr.bf16.mxu0 0
    %330 = vmatpush1.bf16.msra.mxu0 0
    %331 = vmatprep.subr.bf16.mxu0 0
    %332 = vmatpush1.bf16.msra.mxu0 0
    %333 = vmatprep.subr.bf16.mxu0 0
    %334 = vmatpush1.bf16.msra.mxu0 0
    %335 = vmatprep.subr.bf16.mxu0 0
    %336 = vmatpush1.bf16.msra.mxu0 0
    %337 = vmatprep.subr.bf16.mxu0 0
    %338 = vmatpush1.bf16.msra.mxu0 0
    %339 = vmatprep.subr.bf16.mxu0 0
    %340 = vmatpush1.bf16.msra.mxu0 0
    %341 = vmatprep.subr.bf16.mxu0 0
    %342 = vmatpush1.bf16.msra.mxu0 0
    %343 = vmatprep.subr.bf16.mxu0 0
    %344 = vmatpush1.bf16.msra.mxu0 0
    %345 = vmatprep.subr.bf16.mxu0 0
    %346 = vmatpush1.bf16.msra.mxu0 0
    %347 = vmatprep.subr.bf16.mxu0 0
    %348 = vmatpush1.bf16.msra.mxu0 0
    %349 = vmatprep.mubr.bf16.mxu0 0
    %350 = vmatmul.mubr.bf16.gmra.mrb[0].mxu0 %v274
    %v351 = vpop.f32.mrb[0].mxu0
    %v352 = vadd.f32 %v311, %v351
    %v353 = vpop.f32.mrb[0].mxu0
    %v354 = vpop.f32.mrb[0].mxu0
    %v355 = vadd.f32 %v314, %v354
    %v356 = vpop.f32.mrb[0].mxu0
    %357 = vdwg.mxu0
    %v358 = vmax.f32 %v352, 0.0
    %v359 = vmax.f32 %v355, 0.0
    %v360 = vpack.c.bf16 %v359, %v358
    %v361 = vld [vmem:[#allocation8] sm:$0xf]
    %v362 = vld [vmem:[#allocation8 + $0x4] sm:$0xf]
    %v363 = vld [vmem:[#allocation8 + $0x8] sm:$0xf]
    %v364 = vld [vmem:[#allocation8 + $0xc] sm:$0xf]
    %v365 = vld [vmem:[#allocation8 + $0x10] sm:$0xf]
    %v366 = vld [vmem:[#allocation8 + $0x14] sm:$0xf]
    %v367 = vld [vmem:[#allocation8 + $0x18] sm:$0x1]
    %v368 = vld [vmem:[#allocation10] sm:$0x1]
    %v370 = vlaneseq
    %v371 = vshrl.u32 %v370, 7
    %v372 = vsub.s32 0, %v371
    %v373 = vrot.slane %v368, %v372
    %v382 = vunpack.c.l.b16 %v361
    %v383 = vunpack.c.l.b16 %v362
    %v384 = vunpack.c.l.b16 %v363
    %v385 = vunpack.c.l.b16 %v364
    %v386 = vunpack.c.l.b16 %v365
    %v387 = vunpack.c.l.b16 %v366
    %v388 = vunpack.c.l.b16 %v367
    %v389 = vpack.c.b16 %v383, %v382
    %v390 = vpack.c.b16 %v385, %v384
    %v391 = vpack.c.b16 %v387, %v386
    %v392 = vpack.c.b16 %v388, %v388
    %vm396 = vcmask 408576
    %v398 = vsel %vm396, %v360, 0
    %vm400 = vcmask 1040384
    %v402 = vsel %vm400, %v392, 0
    %404 = vmatprep.subr.bf16.mxu0 0
    %405 = vmatpush1.bf16.msra.mxu0 %v389
    %406 = vmatprep.subr.bf16.mxu0 0
    %407 = vmatpush1.bf16.msra.mxu0 %v390
    %408 = vmatprep.subr.bf16.mxu0 0
    %409 = vmatpush1.bf16.msra.mxu0 %v391
    %410 = vmatprep.subr.bf16.mxu0 0
    %411 = vmatpush1.bf16.msra.mxu0 %v402
    %412 = vmatprep.subr.bf16.mxu0 0
    %413 = vmatpush1.bf16.msra.mxu0 0
    %414 = vmatprep.subr.bf16.mxu0 0
    %415 = vmatpush1.bf16.msra.mxu0 0
    %416 = vmatprep.subr.bf16.mxu0 0
    %417 = vmatpush1.bf16.msra.mxu0 0
    %418 = vmatprep.subr.bf16.mxu0 0
    %419 = vmatpush1.bf16.msra.mxu0 0
    %420 = vmatprep.subr.bf16.mxu0 0
    %421 = vmatpush1.bf16.msra.mxu0 0
    %422 = vmatprep.subr.bf16.mxu0 0
    %423 = vmatpush1.bf16.msra.mxu0 0
    %424 = vmatprep.subr.bf16.mxu0 0
    %425 = vmatpush1.bf16.msra.mxu0 0
    %426 = vmatprep.subr.bf16.mxu0 0
    %427 = vmatpush1.bf16.msra.mxu0 0
    %428 = vmatprep.subr.bf16.mxu0 0
    %429 = vmatpush1.bf16.msra.mxu0 0
    %430 = vmatprep.subr.bf16.mxu0 0
    %431 = vmatpush1.bf16.msra.mxu0 0
    %432 = vmatprep.subr.bf16.mxu0 0
    %433 = vmatpush1.bf16.msra.mxu0 0
    %434 = vmatprep.subr.bf16.mxu0 0
    %435 = vmatpush1.bf16.msra.mxu0 0
    %436 = vmatprep.mubr.bf16.mxu0 0
    %437 = vmatmul.mubr.bf16.gmra.mrb[0].mxu0 %v398
    %v438 = vpop.f32.mrb[0].mxu0
    %v439 = vadd.f32 %v373, %v438
    %v440 = vpop.f32.mrb[0].mxu0
    %v441 = vpop.f32.mrb[0].mxu0
    %v442 = vadd.f32 %v373, %v441
    %v443 = vpop.f32.mrb[0].mxu0
    %444 = vdwg.mxu0
    %445 = vmax.xlane.f32.xlu0 %v439
    %v446 = vpop.xlane.xlu0 %445
    %447 = vmax.xlane.f32.xlu0 %v442
    %v448 = vpop.xlane.xlu0 %447
    %v449 = vsub.f32 %v439, %v446
    %v450 = vsub.f32 %v442, %v448
    %v451 = vmul.f32 %v449, 1.442695
    %v452 = vpow.pop %v451
    %v453 = vmul.f32 %v450, 1.442695
    %v454 = vpow.pop %v453
    %455 = vadd.xlane.f32.xlu0 %v452
    %v456 = vpop.xlane.xlu0 %455
    %457 = vadd.xlane.f32.xlu0 %v454
    %v458 = vpop.xlane.xlu0 %457
    %v459 = vrcp.pop %v456
    %v460 = vmul.f32 %v452, %v459
    %v461 = vrcp.pop %v458
    %v462 = vmul.f32 %v454, %v461
    %463 = vst [vmem:[#allocation11] sm:$0xff] %v460
    %464 = vst [vmem:[#allocation11 + $0x8] sm:$0xff] %v462
    // Predicated region
    $region42: #{cnn_forward.5} parent=1 // pred_check
      _
    $region43: #{cnn_forward.5} parent=1 // pred_check_branch
      %466 = sbr.rel (0) target = $region45
    $region44: #{cnn_forward.5} parent=1 // pred_region
      %s468 = ssub.s32 256, 256
      %469 = vsyncadd [#allocation4], %s468
      %s470 = sshll.u32 [#allocation11], 4
      %s471 = int_to_ptr.vmem [resolvable:$true] %s470
      %476 = dma.vmem_to_hbm [thread:$0]  %s471, 256, %s5, [#allocation4], 128, 128, 8
    $region45: #{cnn_forward.5} parent=1 // pred_fallthru
      _
    // Predicated region
    $region46: #{cnn_forward.5} parent=1 // pred_check
      _
    $region47: #{cnn_forward.5} parent=1 // pred_check_branch
      %478 = sbr.rel (0) target = $region49
    $region48: #{cnn_forward.5} parent=1 // pred_region
      %479 = dma.done [#allocation4], 256
    $region49: #{cnn_forward.5} parent=1 // pred_fallthru
      _
    %480 = vsyncpa [#allocation3], 1
    %481 = vsyncpa [#allocation6], 1
    %482 = vsyncpa [#allocation9], 1
    %483 = vsyncpa [#allocation4], 1

</llo_original>
